<compile_context>
chip_gen: v7x
topology: tpu7x:2x2x1
jax: 0.10.0
libtpu: 0.0.40
codegen_flags: <defaults>
</compile_context>

<pallas_src>
import functools

import jax
import jax.numpy as jnp
from jax.experimental import pallas as pl
from jax.experimental.pallas import tpu as pltpu


# --------------------------------------------------------------------------- #
# Kernel
# --------------------------------------------------------------------------- #
def lstmnet_kernel(x_ref, w3_ref, b3_ref, wfc_ref, bfc_ref,
                   prio_ref, h_ref, psum_x_ref, psum_h_ref, *, valid_b):
    """One batch tile of the fused LSTM-step + fc head.

    x_ref      : (tB, S)   f32   input tile (padded rows, if any, are zero)
    w3_ref     : (S, 3H)   bf16  LSTM input weights, f-gate dropped, order [i|o|g]
    b3_ref     : (1, 3H)   f32   folded bias (b_ih + b_hh), same order
    wfc_ref    : (1, H)    f32   fc weight row
    bfc_ref    : (1, 1)    f32   fc bias
    prio_ref   : (tB, 1)   f32   priority output tile
    h_ref      : (tB, H)   f32   lstm_out tile (last-step hidden state)
    psum_x_ref : (1, 1, S) f32   per-tile partial sum of x over valid rows
    psum_h_ref : (1, 1, H) f32   per-tile partial sum of h over valid rows
    """
    x = x_ref[...]                                       # (tB, S) f32
    tB = x.shape[0]
    H = h_ref.shape[1]

    # ---- LSTM single step, h0 = c0 = 0 (forget gate removed at prep time) --
    # bf16 operands -> native MXU path; f32 accumulate.
    gates = jnp.dot(x.astype(jnp.bfloat16), w3_ref[...],
                    preferred_element_type=jnp.float32) + b3_ref[...]

    # sigmoid(z) = 0.5 * tanh(z/2) + 0.5 : one EUP push instead of exp + recip.
    sig = 0.5 * jnp.tanh(0.5 * gates[:, :2 * H]) + 0.5   # [i | o] contiguous
    i_g = sig[:, :H]
    o_g = sig[:, H:]
    g_g = jnp.tanh(gates[:, 2 * H:])

    h = o_g * jnp.tanh(i_g * g_g)                        # c = i*g (f*c0 == 0)
    h_ref[...] = h

    # ---- fc head: VPU multiply + lane reduction (no 1-lane MXU matmul) -----
    prio_ref[...] = (jnp.sum(h * wfc_ref[...], axis=-1, keepdims=True)
                     + bfc_ref[...])

    # ---- per-tile partial sums for the batch means --------------------------
    # Padded rows have x == 0 (so psum_x is already exact) but a nonzero
    # bias-driven h, so mask h by the global row index before summing.
    row = (pl.program_id(0) * tB
           + jax.lax.broadcasted_iota(jnp.int32, (tB, 1), 0))
    h_valid = jnp.where(row < valid_b, h, 0.0)
    psum_x_ref[...] = jnp.sum(x, axis=0, keepdims=True)[None]
    psum_h_ref[...] = jnp.sum(h_valid, axis=0, keepdims=True)[None]


# --------------------------------------------------------------------------- #
# Parameter prep (one-time layout transform of PyTorch-layout weights)
# --------------------------------------------------------------------------- #
def _prep_params(params):
    """Drop the dead forget gate, reorder gates to [i|o|g], fold the two biases
    and pre-transpose the weight (stored bf16 for the MXU / half the DMA)."""
    H = params["w_hh"].shape[1]
    w_ih = params["w_ih"]                        # (4H, S), PyTorch order [i,f,g,o]
    b = params["b_ih"] + params["b_hh"]          # (4H,)
    w3 = jnp.concatenate([w_ih[0:H], w_ih[3 * H:4 * H], w_ih[2 * H:3 * H]],
                         axis=0)                 # (3H, S) in order [i|o|g]
    b3 = jnp.concatenate([b[0:H], b[3 * H:4 * H], b[2 * H:3 * H]])
    return {
        "w3_t": jnp.asarray(w3.T, jnp.bfloat16),              # (S, 3H) bf16
        "b3": jnp.asarray(b3.reshape(1, 3 * H), jnp.float32),
        "w_fc": jnp.asarray(params["w_fc"].reshape(1, H), jnp.float32),
        "b_fc": jnp.asarray(params["b_fc"].reshape(1, 1), jnp.float32),
        "hidden": H,
    }


# --------------------------------------------------------------------------- #
# Tile sizing / VMEM budgeting
# --------------------------------------------------------------------------- #
_VMEM_BUDGET = 48 << 20   # target working set (headroom below v7x's 64 MiB)


def _round_up(x, m):
    return ((x + m - 1) // m) * m


def _vmem_bytes(block_b, S, H):
    """Rough per-call VMEM working set (double-buffered tiles + intermediates)."""
    G = 3 * H
    b = 2 * block_b * S * 4            # x tile, double-buffered, f32
    b += 2 * S * G * 2                 # w3_t (bf16; at most 2 buffers)
    b += 2 * (G + H + 1) * 4           # b3, w_fc, b_fc
    b += 2 * block_b * (H + 1) * 4     # h + prio output tiles, double-buffered
    b += 2 * (S + H) * 4               # psum output tiles
    b += 4 * block_b * G * 4           # gate-sized f32 intermediates
    return b


def _pick_block_b(B, S, H, budget=_VMEM_BUDGET):
    """Largest multiple-of-8 batch tile (up to 1024 rows) fitting the VMEM
    budget; keeps >= 2 grid steps whenever B >= 16 so the "parallel" axis can
    shard across v7x's two TensorCores."""
    bb = 1024
    while bb > 8 and _vmem_bytes(bb, S, H) > budget:
        bb -= 8
    if B >= 16:
        bb = min(bb, _round_up(-(-B // 2), 8))
    return max(8, min(bb, _round_up(B, 8)))


def _const_spec(shape, single_buffer):
    """BlockSpec for a grid-invariant operand; single-buffered when supported."""
    ndim = len(shape)
    index_map = lambda i, _nd=ndim: (0,) * _nd
    if single_buffer and hasattr(pl, "Buffered"):
        try:
            return pl.BlockSpec(shape, index_map, pipeline_mode=pl.Buffered(1))
        except TypeError:
            pass
    return pl.BlockSpec(shape, index_map)


# --------------------------------------------------------------------------- #
# Forward wrapper (mirrors LSTMNet.forward)
# --------------------------------------------------------------------------- #
def lstmnet_forward(x, prep, *, block_b=None):
    """Returns (priority, activations, h_list) matching LSTMNet.forward."""
    B, S = x.shape
    H = prep["hidden"]

    if block_b is None:
        block_b = _pick_block_b(B, S, H)
    block_b = max(8, _round_up(int(block_b), 8))     # (8, 128) sublane rule

    n_tiles = pl.cdiv(B, block_b)
    B_pad = n_tiles * block_b
    x_pad = x if B_pad == B else jnp.concatenate(
        [x, jnp.zeros((B_pad - B, S), x.dtype)], axis=0)

    vmem_limit = int(min(56 << 20, max(16 << 20, 2 * _vmem_bytes(block_b, S, H))))

    def call(single_buffer_weights):
        kernel = functools.partial(lstmnet_kernel, valid_b=B)
        return pl.pallas_call(
            kernel,
            grid=(n_tiles,),
            out_shape=(
                jax.ShapeDtypeStruct((B_pad, 1), jnp.float32),        # priority
                jax.ShapeDtypeStruct((B_pad, H), jnp.float32),        # lstm_out
                jax.ShapeDtypeStruct((n_tiles, 1, S), jnp.float32),   # psum x
                jax.ShapeDtypeStruct((n_tiles, 1, H), jnp.float32),   # psum h
            ),
            in_specs=[
                pl.BlockSpec((block_b, S), lambda i: (i, 0)),         # x tile
                _const_spec((S, 3 * H), single_buffer_weights),       # w3_t
                _const_spec((1, 3 * H), single_buffer_weights),       # b3
                _const_spec((1, H), single_buffer_weights),           # w_fc
                _const_spec((1, 1), single_buffer_weights),           # b_fc
            ],
            out_specs=(
                pl.BlockSpec((block_b, 1), lambda i: (i, 0)),
                pl.BlockSpec((block_b, H), lambda i: (i, 0)),
                pl.BlockSpec((1, 1, S), lambda i: (i, 0, 0)),
                pl.BlockSpec((1, 1, H), lambda i: (i, 0, 0)),
            ),
            compiler_params=pltpu.CompilerParams(
                dimension_semantics=("parallel",),                    # v7x: 2 TCs
                vmem_limit_bytes=vmem_limit),
        )(x_pad, prep["w3_t"], prep["b3"], prep["w_fc"], prep["b_fc"])

    try:
        prio_pad, h_pad, psum_x, psum_h = call(True)
    except Exception:
        # JAX version without (or rejecting) pipeline_mode=Buffered(1).
        prio_pad, h_pad, psum_x, psum_h = call(False)

    prio = prio_pad[:B]
    h = h_pad[:B]

    inv_b = 1.0 / B
    mean_x = jnp.sum(psum_x, axis=(0, 1))[None, :] * inv_b            # (1, S)
    mean_h = jnp.sum(psum_h, axis=(0, 1))[None, :] * inv_b            # (1, H)

    activations = {
        "lstm": h.reshape(B, 1, H),   # lstm_out before [:, -1, :]
        "fc": prio,
    }
    h_list = [mean_x, mean_h]
    return prio, activations, h_list


# --------------------------------------------------------------------------- #
# Init + pure-JAX reference (for validation)
# --------------------------------------------------------------------------- #
def init_params(key, state_size, hidden_size):
    """Deterministic PyTorch-style uniform(-1/sqrt(H), 1/sqrt(H)) init."""
    k = 1.0 / jnp.sqrt(jnp.float32(hidden_size))
    keys = jax.random.split(key, 6)
    u = lambda kk, shape: jax.random.uniform(kk, shape, jnp.float32, -k, k)
    return {
        "w_ih": u(keys[0], (4 * hidden_size, state_size)),
        "w_hh": u(keys[1], (4 * hidden_size, hidden_size)),
        "b_ih": u(keys[2], (4 * hidden_size,)),
        "b_hh": u(keys[3], (4 * hidden_size,)),
        "w_fc": u(keys[4], (1, hidden_size)),
        "b_fc": u(keys[5], (1,)),
    }


def _reference(x, params):
    """Pure-JAX f32 reference of the same forward pass (PyTorch layout)."""
    H = params["w_hh"].shape[1]
    gates = x @ params["w_ih"].T + params["b_ih"] + params["b_hh"]
    i_g = jax.nn.sigmoid(gates[:, 0 * H:1 * H])
    g_g = jnp.tanh(gates[:, 2 * H:3 * H])
    o_g = jax.nn.sigmoid(gates[:, 3 * H:4 * H])
    h = o_g * jnp.tanh(i_g * g_g)
    prio = h @ params["w_fc"].T + params["b_fc"]
    return prio, h, jnp.mean(x, 0, keepdims=True), jnp.mean(h, 0, keepdims=True)


# --------------------------------------------------------------------------- #
if __name__ == "__main__":
    B, STATE, HIDDEN = 16, 16, 32
    key = jax.random.PRNGKey(0)
    kx, kp = jax.random.split(key)
    x = jax.random.normal(kx, (B, STATE), dtype=jnp.float32)
    params = init_params(kp, STATE, HIDDEN)
    prep = _prep_params(params)   # one-time weight layout transform (bf16 w3_t)

    # Auto tile picker -> block_b=8, 2 grid tiles: exercises the parallel batch
    # axis + per-tile partial-sum finalization.
    priority, activations, h_list = lstmnet_forward(x, prep)
    jax.block_until_ready((priority, activations, h_list))

    # correctness vs. pure-JAX f32 reference (relaxed: bf16 MXU operands)
    ref_p, ref_h, ref_mx, ref_mh = _reference(x, params)
    assert jnp.allclose(priority, ref_p, atol=2e-2, rtol=2e-2)
    assert jnp.allclose(activations["lstm"].reshape(B, HIDDEN), ref_h,
                        atol=2e-2, rtol=2e-2)
    assert jnp.allclose(h_list[0], ref_mx, atol=1e-5)   # x mean stays exact f32
    assert jnp.allclose(h_list[1], ref_mh, atol=2e-2, rtol=2e-2)

    # Non-divisible batch: exercises the pad + row-mask path (B=13, 2 tiles of 8,
    # 3 padded rows excluded from the batch means).
    xb = x[:13]
    p2, _, hl2 = lstmnet_forward(xb, prep, block_b=8)
    jax.block_until_ready(p2)
    r_p, _, r_mx, r_mh = _reference(xb, params)
    assert jnp.allclose(p2, r_p, atol=2e-2, rtol=2e-2)
    assert jnp.allclose(hl2[0], r_mx, atol=1e-5)
    assert jnp.allclose(hl2[1], r_mh, atol=2e-2, rtol=2e-2)

    print("KERNEL_OK")
</pallas_src>

<mosaic_0001>
module attributes {stable_mosaic.version = 11 : i64} {
  func.func @lstmnet_kernel(%arg0: i32, %arg1: memref<8x16xf32, #tpu.memory_space<vmem>>, %arg2: memref<16x96xbf16, #tpu.memory_space<vmem>>, %arg3: memref<1x96xf32, #tpu.memory_space<vmem>>, %arg4: memref<1x32xf32, #tpu.memory_space<vmem>>, %arg5: memref<1x1xf32, #tpu.memory_space<vmem>>, %arg6: memref<8x1xf32, #tpu.memory_space<vmem>>, %arg7: memref<8x32xf32, #tpu.memory_space<vmem>>, %arg8: memref<1x1x16xf32, #tpu.memory_space<vmem>>, %arg9: memref<1x1x32xf32, #tpu.memory_space<vmem>>) attributes {dimension_semantics = [#tpu.dimension_semantics<parallel>], iteration_bounds = array<i64: 2>, scalar_prefetch = 0 : i64, scratch_operands = 0 : i64, tpu.core_type = #tpu.core_type<tc>, window_params = [{transform_indices = @transform_0, window_bounds = array<i64: 8, 16>}, {pipeline_mode = #tpu.pipeline_mode<synchronous>, transform_indices = @transform_1, window_bounds = array<i64: 16, 96>}, {pipeline_mode = #tpu.pipeline_mode<synchronous>, transform_indices = @transform_2, window_bounds = array<i64: 1, 96>}, {pipeline_mode = #tpu.pipeline_mode<synchronous>, transform_indices = @transform_3, window_bounds = array<i64: 1, 32>}, {pipeline_mode = #tpu.pipeline_mode<synchronous>, transform_indices = @transform_4, window_bounds = array<i64: 1, 1>}, {transform_indices = @transform_5, window_bounds = array<i64: 8, 1>}, {transform_indices = @transform_6, window_bounds = array<i64: 8, 32>}, {transform_indices = @transform_7, window_bounds = array<i64: 1, 1, 16>}, {transform_indices = @transform_8, window_bounds = array<i64: 1, 1, 32>}]} {
    %c0 = arith.constant 0 : index
    %c0_0 = arith.constant 0 : index
    %0 = vector.load %arg1[%c0, %c0_0] : memref<8x16xf32, #tpu.memory_space<vmem>>, vector<8x16xf32>
    %1 = arith.truncf %0 : vector<8x16xf32> to vector<8x16xbf16>
    %c0_1 = arith.constant 0 : index
    %c0_2 = arith.constant 0 : index
    %2 = vector.load %arg2[%c0_1, %c0_2] : memref<16x96xbf16, #tpu.memory_space<vmem>>, vector<16x96xbf16>
    %cst = arith.constant dense<0.000000e+00> : vector<8x96xf32>
    %3 = tpu.matmul %1, %2, %cst {dimension_numbers = #tpu.dot_dimension_numbers<[1], [0], [0], [1], [0, 0, 1, 1], [], []>} : vector<8x16xbf16>, vector<16x96xbf16>, vector<8x96xf32> -> vector<8x96xf32>
    %c0_3 = arith.constant 0 : index
    %c0_4 = arith.constant 0 : index
    %4 = vector.load %arg3[%c0_3, %c0_4] : memref<1x96xf32, #tpu.memory_space<vmem>>, vector<1x96xf32>
    %5 = vector.broadcast %4 : vector<1x96xf32> to vector<8x96xf32>
    %6 = arith.addf %3, %5 : vector<8x96xf32>
    %7 = vector.extract_strided_slice %6 {offsets = [0, 0], sizes = [8, 64], strides = [1, 1]} : vector<8x96xf32> to vector<8x64xf32>
    %cst_5 = arith.constant 5.000000e-01 : f32
    %8 = vector.broadcast %cst_5 : f32 to vector<8x64xf32>
    %9 = arith.mulf %8, %7 : vector<8x64xf32>
    %10 = math.tanh %9 : vector<8x64xf32>
    %cst_6 = arith.constant 5.000000e-01 : f32
    %11 = vector.broadcast %cst_6 : f32 to vector<8x64xf32>
    %12 = arith.mulf %11, %10 : vector<8x64xf32>
    %cst_7 = arith.constant 5.000000e-01 : f32
    %13 = vector.broadcast %cst_7 : f32 to vector<8x64xf32>
    %14 = arith.addf %12, %13 : vector<8x64xf32>
    %15 = vector.extract_strided_slice %14 {offsets = [0, 0], sizes = [8, 32], strides = [1, 1]} : vector<8x64xf32> to vector<8x32xf32>
    %16 = vector.extract_strided_slice %14 {offsets = [0, 32], sizes = [8, 32], strides = [1, 1]} : vector<8x64xf32> to vector<8x32xf32>
    %17 = vector.extract_strided_slice %6 {offsets = [0, 64], sizes = [8, 32], strides = [1, 1]} : vector<8x96xf32> to vector<8x32xf32>
    %18 = math.tanh %17 : vector<8x32xf32>
    %19 = arith.mulf %15, %18 : vector<8x32xf32>
    %20 = math.tanh %19 : vector<8x32xf32>
    %21 = arith.mulf %16, %20 : vector<8x32xf32>
    %c0_8 = arith.constant 0 : index
    %c0_9 = arith.constant 0 : index
    %22 = vector.load %arg7[%c0_8, %c0_9] : memref<8x32xf32, #tpu.memory_space<vmem>>, vector<8x32xf32>
    tpu.vector_store %arg7[%c0_8, %c0_9], %21 {strides = array<i32>} : memref<8x32xf32, #tpu.memory_space<vmem>>, vector<8x32xf32>,
    %c0_10 = arith.constant 0 : index
    %c0_11 = arith.constant 0 : index
    %23 = vector.load %arg4[%c0_10, %c0_11] : memref<1x32xf32, #tpu.memory_space<vmem>>, vector<1x32xf32>
    %24 = vector.broadcast %23 : vector<1x32xf32> to vector<8x32xf32>
    %25 = arith.mulf %21, %24 : vector<8x32xf32>
    %cst_12 = arith.constant dense<0.000000e+00> : vector<8xf32>
    %26 = vector.multi_reduction <add>, %25, %cst_12 [1] : vector<8x32xf32> to vector<8xf32>
    %27 = vector.shape_cast %26 : vector<8xf32> to vector<8x1xf32>
    %c0_13 = arith.constant 0 : index
    %c0_14 = arith.constant 0 : index
    %28 = vector.load %arg5[%c0_13, %c0_14] : memref<1x1xf32, #tpu.memory_space<vmem>>, vector<1x1xf32>
    %29 = vector.broadcast %28 : vector<1x1xf32> to vector<8x1xf32>
    %30 = arith.addf %27, %29 : vector<8x1xf32>
    %c0_15 = arith.constant 0 : index
    %c0_16 = arith.constant 0 : index
    %31 = vector.load %arg6[%c0_15, %c0_16] : memref<8x1xf32, #tpu.memory_space<vmem>>, vector<8x1xf32>
    tpu.vector_store %arg6[%c0_15, %c0_16], %30 {strides = array<i32>} : memref<8x1xf32, #tpu.memory_space<vmem>>, vector<8x1xf32>,
    %c8_i32 = arith.constant 8 : i32
    %32 = arith.muli %arg0, %c8_i32 : i32
    %33 = tpu.iota {dimensions = array<i32: 0>} : vector<8x1xi32>
    %34 = vector.broadcast %32 : i32 to vector<8x1xi32>
    %35 = arith.addi %34, %33 : vector<8x1xi32>
    %c16_i32 = arith.constant 16 : i32
    %36 = vector.broadcast %c16_i32 : i32 to vector<8x1xi32>
    %37 = arith.cmpi slt, %35, %36 : vector<8x1xi32>
    %cst_17 = arith.constant 0.000000e+00 : f32
    %38 = vector.shape_cast %37 : vector<8x1xi1> to vector<8x1xi1>
    %39 = vector.broadcast %38 : vector<8x1xi1> to vector<8x32xi1>
    %40 = vector.broadcast %cst_17 : f32 to vector<8x32xf32>
    %41 = arith.select %39, %21, %40 : vector<8x32xi1>, vector<8x32xf32>
    %cst_18 = arith.constant dense<0.000000e+00> : vector<16xf32>
    %42 = vector.multi_reduction <add>, %0, %cst_18 [0] : vector<8x16xf32> to vector<16xf32>
    %43 = vector.shape_cast %42 : vector<16xf32> to vector<1x16xf32>
    %44 = vector.shape_cast %43 : vector<1x16xf32> to vector<1x1x16xf32>
    %c0_19 = arith.constant 0 : index
    %c0_20 = arith.constant 0 : index
    %c0_21 = arith.constant 0 : index
    %45 = vector.load %arg8[%c0_19, %c0_20, %c0_21] : memref<1x1x16xf32, #tpu.memory_space<vmem>>, vector<1x1x16xf32>
    tpu.vector_store %arg8[%c0_19, %c0_20, %c0_21], %44 {strides = array<i32>} : memref<1x1x16xf32, #tpu.memory_space<vmem>>, vector<1x1x16xf32>,
    %cst_22 = arith.constant dense<0.000000e+00> : vector<32xf32>
    %46 = vector.multi_reduction <add>, %41, %cst_22 [0] : vector<8x32xf32> to vector<32xf32>
    %47 = vector.shape_cast %46 : vector<32xf32> to vector<1x32xf32>
    %48 = vector.shape_cast %47 : vector<1x32xf32> to vector<1x1x32xf32>
    %c0_23 = arith.constant 0 : index
    %c0_24 = arith.constant 0 : index
    %c0_25 = arith.constant 0 : index
    %49 = vector.load %arg9[%c0_23, %c0_24, %c0_25] : memref<1x1x32xf32, #tpu.memory_space<vmem>>, vector<1x1x32xf32>
    tpu.vector_store %arg9[%c0_23, %c0_24, %c0_25], %48 {strides = array<i32>} : memref<1x1x32xf32, #tpu.memory_space<vmem>>, vector<1x1x32xf32>,
    return
  }
  func.func @transform_0(%arg0: i32) -> (i32, i32) {
    %c0_i32 = arith.constant 0 : i32
    %c0_i32_0 = arith.constant 0 : i32
    return %arg0, %c0_i32 : i32, i32
  }
  func.func @transform_1(%arg0: i32) -> (i32, i32) {
    %c0_i32 = arith.constant 0 : i32
    %c0_i32_0 = arith.constant 0 : i32
    %c0_i32_1 = arith.constant 0 : i32
    return %c0_i32, %c0_i32_0 : i32, i32
  }
  func.func @transform_2(%arg0: i32) -> (i32, i32) {
    %c0_i32 = arith.constant 0 : i32
    %c0_i32_0 = arith.constant 0 : i32
    %c0_i32_1 = arith.constant 0 : i32
    return %c0_i32, %c0_i32_0 : i32, i32
  }
  func.func @transform_3(%arg0: i32) -> (i32, i32) {
    %c0_i32 = arith.constant 0 : i32
    %c0_i32_0 = arith.constant 0 : i32
    %c0_i32_1 = arith.constant 0 : i32
    return %c0_i32, %c0_i32_0 : i32, i32
  }
  func.func @transform_4(%arg0: i32) -> (i32, i32) {
    %c0_i32 = arith.constant 0 : i32
    %c0_i32_0 = arith.constant 0 : i32
    %c0_i32_1 = arith.constant 0 : i32
    return %c0_i32, %c0_i32_0 : i32, i32
  }
  func.func @transform_5(%arg0: i32) -> (i32, i32) {
    %c0_i32 = arith.constant 0 : i32
    %c0_i32_0 = arith.constant 0 : i32
    return %arg0, %c0_i32 : i32, i32
  }
  func.func @transform_6(%arg0: i32) -> (i32, i32) {
    %c0_i32 = arith.constant 0 : i32
    %c0_i32_0 = arith.constant 0 : i32
    return %arg0, %c0_i32 : i32, i32
  }
  func.func @transform_7(%arg0: i32) -> (i32, i32, i32) {
    %c0_i32 = arith.constant 0 : i32
    %c0_i32_0 = arith.constant 0 : i32
    %c0_i32_1 = arith.constant 0 : i32
    return %arg0, %c0_i32, %c0_i32_0 : i32, i32, i32
  }
  func.func @transform_8(%arg0: i32) -> (i32, i32, i32) {
    %c0_i32 = arith.constant 0 : i32
    %c0_i32_0 = arith.constant 0 : i32
    %c0_i32_1 = arith.constant 0 : i32
    return %arg0, %c0_i32, %c0_i32_0 : i32, i32, i32
  }
}

module attributes {stable_mosaic.version = 11 : i64} {
  func.func @lstmnet_kernel(%arg0: i32, %arg1: memref<8x16xf32, #tpu.memory_space<vmem>>, %arg2: memref<16x96xbf16, #tpu.memory_space<vmem>>, %arg3: memref<1x96xf32, #tpu.memory_space<vmem>>, %arg4: memref<1x32xf32, #tpu.memory_space<vmem>>, %arg5: memref<1x1xf32, #tpu.memory_space<vmem>>, %arg6: memref<8x1xf32, #tpu.memory_space<vmem>>, %arg7: memref<8x32xf32, #tpu.memory_space<vmem>>, %arg8: memref<1x1x16xf32, #tpu.memory_space<vmem>>, %arg9: memref<1x1x32xf32, #tpu.memory_space<vmem>>) attributes {dimension_semantics = [#tpu.dimension_semantics<parallel>], iteration_bounds = array<i64: 2>, scalar_prefetch = 0 : i64, scratch_operands = 0 : i64, tpu.core_type = #tpu.core_type<tc>, window_params = [{transform_indices = @transform_0, window_bounds = array<i64: 8, 16>}, {pipeline_mode = #tpu.pipeline_mode<synchronous>, transform_indices = @transform_1, window_bounds = array<i64: 16, 96>}, {pipeline_mode = #tpu.pipeline_mode<synchronous>, transform_indices = @transform_2, window_bounds = array<i64: 1, 96>}, {pipeline_mode = #tpu.pipeline_mode<synchronous>, transform_indices = @transform_3, window_bounds = array<i64: 1, 32>}, {pipeline_mode = #tpu.pipeline_mode<synchronous>, transform_indices = @transform_4, window_bounds = array<i64: 1, 1>}, {transform_indices = @transform_5, window_bounds = array<i64: 8, 1>}, {transform_indices = @transform_6, window_bounds = array<i64: 8, 32>}, {transform_indices = @transform_7, window_bounds = array<i64: 1, 1, 16>}, {transform_indices = @transform_8, window_bounds = array<i64: 1, 1, 32>}]} {
    %c0 = arith.constant 0 : index
    %c0_0 = arith.constant 0 : index
    %0 = vector.load %arg1[%c0, %c0_0] : memref<8x16xf32, #tpu.memory_space<vmem>>, vector<8x16xf32>
    %1 = arith.truncf %0 : vector<8x16xf32> to vector<8x16xbf16>
    %c0_1 = arith.constant 0 : index
    %c0_2 = arith.constant 0 : index
    %2 = vector.load %arg2[%c0_1, %c0_2] : memref<16x96xbf16, #tpu.memory_space<vmem>>, vector<16x96xbf16>
    %cst = arith.constant dense<0.000000e+00> : vector<8x96xf32>
    %3 = tpu.matmul %1, %2, %cst {dimension_numbers = #tpu.dot_dimension_numbers<[1], [0], [0], [1], [0, 0, 1, 1], [], []>} : vector<8x16xbf16>, vector<16x96xbf16>, vector<8x96xf32> -> vector<8x96xf32>
    %c0_3 = arith.constant 0 : index
    %c0_4 = arith.constant 0 : index
    %4 = vector.load %arg3[%c0_3, %c0_4] : memref<1x96xf32, #tpu.memory_space<vmem>>, vector<1x96xf32>
    %5 = vector.broadcast %4 : vector<1x96xf32> to vector<8x96xf32>
    %6 = arith.addf %3, %5 : vector<8x96xf32>
    %7 = vector.extract_strided_slice %6 {offsets = [0, 0], sizes = [8, 64], strides = [1, 1]} : vector<8x96xf32> to vector<8x64xf32>
    %cst_5 = arith.constant 5.000000e-01 : f32
    %8 = vector.broadcast %cst_5 : f32 to vector<8x64xf32>
    %9 = arith.mulf %8, %7 : vector<8x64xf32>
    %10 = math.tanh %9 : vector<8x64xf32>
    %cst_6 = arith.constant 5.000000e-01 : f32
    %11 = vector.broadcast %cst_6 : f32 to vector<8x64xf32>
    %12 = arith.mulf %11, %10 : vector<8x64xf32>
    %cst_7 = arith.constant 5.000000e-01 : f32
    %13 = vector.broadcast %cst_7 : f32 to vector<8x64xf32>
    %14 = arith.addf %12, %13 : vector<8x64xf32>
    %15 = vector.extract_strided_slice %14 {offsets = [0, 0], sizes = [8, 32], strides = [1, 1]} : vector<8x64xf32> to vector<8x32xf32>
    %16 = vector.extract_strided_slice %14 {offsets = [0, 32], sizes = [8, 32], strides = [1, 1]} : vector<8x64xf32> to vector<8x32xf32>
    %17 = vector.extract_strided_slice %6 {offsets = [0, 64], sizes = [8, 32], strides = [1, 1]} : vector<8x96xf32> to vector<8x32xf32>
    %18 = math.tanh %17 : vector<8x32xf32>
    %19 = arith.mulf %15, %18 : vector<8x32xf32>
    %20 = math.tanh %19 : vector<8x32xf32>
    %21 = arith.mulf %16, %20 : vector<8x32xf32>
    %c0_8 = arith.constant 0 : index
    %c0_9 = arith.constant 0 : index
    %22 = vector.load %arg7[%c0_8, %c0_9] : memref<8x32xf32, #tpu.memory_space<vmem>>, vector<8x32xf32>
    tpu.vector_store %arg7[%c0_8, %c0_9], %21 {strides = array<i32>} : memref<8x32xf32, #tpu.memory_space<vmem>>, vector<8x32xf32>,
    %c0_10 = arith.constant 0 : index
    %c0_11 = arith.constant 0 : index
    %23 = vector.load %arg4[%c0_10, %c0_11] : memref<1x32xf32, #tpu.memory_space<vmem>>, vector<1x32xf32>
    %24 = vector.broadcast %23 : vector<1x32xf32> to vector<8x32xf32>
    %25 = arith.mulf %21, %24 : vector<8x32xf32>
    %cst_12 = arith.constant dense<0.000000e+00> : vector<8xf32>
    %26 = vector.multi_reduction <add>, %25, %cst_12 [1] : vector<8x32xf32> to vector<8xf32>
    %27 = vector.shape_cast %26 : vector<8xf32> to vector<8x1xf32>
    %c0_13 = arith.constant 0 : index
    %c0_14 = arith.constant 0 : index
    %28 = vector.load %arg5[%c0_13, %c0_14] : memref<1x1xf32, #tpu.memory_space<vmem>>, vector<1x1xf32>
    %29 = vector.broadcast %28 : vector<1x1xf32> to vector<8x1xf32>
    %30 = arith.addf %27, %29 : vector<8x1xf32>
    %c0_15 = arith.constant 0 : index
    %c0_16 = arith.constant 0 : index
    %31 = vector.load %arg6[%c0_15, %c0_16] : memref<8x1xf32, #tpu.memory_space<vmem>>, vector<8x1xf32>
    tpu.vector_store %arg6[%c0_15, %c0_16], %30 {strides = array<i32>} : memref<8x1xf32, #tpu.memory_space<vmem>>, vector<8x1xf32>,
    %c8_i32 = arith.constant 8 : i32
    %32 = arith.muli %arg0, %c8_i32 : i32
    %33 = tpu.iota {dimensions = array<i32: 0>} : vector<8x1xi32>
    %34 = vector.broadcast %32 : i32 to vector<8x1xi32>
    %35 = arith.addi %34, %33 : vector<8x1xi32>
    %c16_i32 = arith.constant 16 : i32
    %36 = vector.broadcast %c16_i32 : i32 to vector<8x1xi32>
    %37 = arith.cmpi slt, %35, %36 : vector<8x1xi32>
    %cst_17 = arith.constant 0.000000e+00 : f32
    %38 = vector.shape_cast %37 : vector<8x1xi1> to vector<8x1xi1>
    %39 = vector.broadcast %38 : vector<8x1xi1> to vector<8x32xi1>
    %40 = vector.broadcast %cst_17 : f32 to vector<8x32xf32>
    %41 = arith.select %39, %21, %40 : vector<8x32xi1>, vector<8x32xf32>
    %cst_18 = arith.constant dense<0.000000e+00> : vector<16xf32>
    %42 = vector.multi_reduction <add>, %0, %cst_18 [0] : vector<8x16xf32> to vector<16xf32>
    %43 = vector.shape_cast %42 : vector<16xf32> to vector<1x16xf32>
    %44 = vector.shape_cast %43 : vector<1x16xf32> to vector<1x1x16xf32>
    %c0_19 = arith.constant 0 : index
    %c0_20 = arith.constant 0 : index
    %c0_21 = arith.constant 0 : index
    %45 = vector.load %arg8[%c0_19, %c0_20, %c0_21] : memref<1x1x16xf32, #tpu.memory_space<vmem>>, vector<1x1x16xf32>
    tpu.vector_store %arg8[%c0_19, %c0_20, %c0_21], %44 {strides = array<i32>} : memref<1x1x16xf32, #tpu.memory_space<vmem>>, vector<1x1x16xf32>,
    %cst_22 = arith.constant dense<0.000000e+00> : vector<32xf32>
    %46 = vector.multi_reduction <add>, %41, %cst_22 [0] : vector<8x32xf32> to vector<32xf32>
    %47 = vector.shape_cast %46 : vector<32xf32> to vector<1x32xf32>
    %48 = vector.shape_cast %47 : vector<1x32xf32> to vector<1x1x32xf32>
    %c0_23 = arith.constant 0 : index
    %c0_24 = arith.constant 0 : index
    %c0_25 = arith.constant 0 : index
    %49 = vector.load %arg9[%c0_23, %c0_24, %c0_25] : memref<1x1x32xf32, #tpu.memory_space<vmem>>, vector<1x1x32xf32>
    tpu.vector_store %arg9[%c0_23, %c0_24, %c0_25], %48 {strides = array<i32>} : memref<1x1x32xf32, #tpu.memory_space<vmem>>, vector<1x1x32xf32>,
    return
  }
  func.func @transform_0(%arg0: i32) -> (i32, i32) {
    %c0_i32 = arith.constant 0 : i32
    %c0_i32_0 = arith.constant 0 : i32
    return %arg0, %c0_i32 : i32, i32
  }
  func.func @transform_1(%arg0: i32) -> (i32, i32) {
    %c0_i32 = arith.constant 0 : i32
    %c0_i32_0 = arith.constant 0 : i32
    %c0_i32_1 = arith.constant 0 : i32
    return %c0_i32, %c0_i32_0 : i32, i32
  }
  func.func @transform_2(%arg0: i32) -> (i32, i32) {
    %c0_i32 = arith.constant 0 : i32
    %c0_i32_0 = arith.constant 0 : i32
    %c0_i32_1 = arith.constant 0 : i32
    return %c0_i32, %c0_i32_0 : i32, i32
  }
  func.func @transform_3(%arg0: i32) -> (i32, i32) {
    %c0_i32 = arith.constant 0 : i32
    %c0_i32_0 = arith.constant 0 : i32
    %c0_i32_1 = arith.constant 0 : i32
    return %c0_i32, %c0_i32_0 : i32, i32
  }
  func.func @transform_4(%arg0: i32) -> (i32, i32) {
    %c0_i32 = arith.constant 0 : i32
    %c0_i32_0 = arith.constant 0 : i32
    %c0_i32_1 = arith.constant 0 : i32
    return %c0_i32, %c0_i32_0 : i32, i32
  }
  func.func @transform_5(%arg0: i32) -> (i32, i32) {
    %c0_i32 = arith.constant 0 : i32
    %c0_i32_0 = arith.constant 0 : i32
    return %arg0, %c0_i32 : i32, i32
  }
  func.func @transform_6(%arg0: i32) -> (i32, i32) {
    %c0_i32 = arith.constant 0 : i32
    %c0_i32_0 = arith.constant 0 : i32
    return %arg0, %c0_i32 : i32, i32
  }
  func.func @transform_7(%arg0: i32) -> (i32, i32, i32) {
    %c0_i32 = arith.constant 0 : i32
    %c0_i32_0 = arith.constant 0 : i32
    %c0_i32_1 = arith.constant 0 : i32
    return %arg0, %c0_i32, %c0_i32_0 : i32, i32, i32
  }
  func.func @transform_8(%arg0: i32) -> (i32, i32, i32) {
    %c0_i32 = arith.constant 0 : i32
    %c0_i32_0 = arith.constant 0 : i32
    %c0_i32_1 = arith.constant 0 : i32
    return %arg0, %c0_i32, %c0_i32_0 : i32, i32, i32
  }
}

</mosaic_0001>

<llo_original>
// kernel: tpu_custom_call.1
$region0: #{tpu_custom_call.1}
  #allocation0 [shape = 'u32[]', space=smem, size = 0x4, offset = 0x4, fixed_abs, tag = 'smem constant byte address 0x4 - core index']
  #allocation1 [shape = 'u32[144,128]{1,0:T(1,128)}', space=vmem, size = 0x12000, scoped, tag = 'internal scratch']
  #allocation2 [shape = 'f32[1,1]{1,0:T(1,128)S(1)}', space=vmem, size = 0x200, scoped, tag = 'scoped memory for tpu_custom_call.1']
  %s0 = inlined_call_operand.hbm [shape: f32[16,16], index: 0, kind: input, shape index: {}]
  %s1 = inlined_call_operand.hbm [shape: bf16[16,96], index: 1, kind: input, shape index: {}]
  %s2 = inlined_call_operand.vmem [shape: f32[1,96], index: 2, kind: input, shape index: {}]
  %s3 = inlined_call_operand.vmem [shape: f32[1,32], index: 3, kind: input, shape index: {}]
  %s4 = inlined_call_operand.<no memory space> [shape: f32[1,1], index: 4, kind: input, shape index: {}]
  %s5 = inlined_call_operand.vmem [shape: f32[16,1], index: 5, kind: output, shape index: {0}]
  %s6 = inlined_call_operand.hbm [shape: f32[16,32], index: 6, kind: output, shape index: {1}]
  %s7 = inlined_call_operand.hbm [shape: f32[2,1,16], index: 7, kind: output, shape index: {2}]
  %s8 = inlined_call_operand.hbm [shape: f32[2,1,32], index: 8, kind: output, shape index: {3}]
  %9 = xla_tuple %s5, %s6, %s7, %s8
  %s10 = sld [smem:[#allocation0]]
  $region85: #{tpu_custom_call.1} parent=0
    _
  %s12 = ssub.s32 1, %s10
  %s13 = scalar_select 0, %s12, %s10
  %v14 = vstv %s4
  %15 = vst [vmem:[#allocation2] sm:$0x1] %v14
  $region1: #{tpu_custom_call.1} parent=0
    #allocation3 [shape = 'u8[8192]{0}', space=vmem, size = 0x2000, scoped, tag = 'input window, operand 0']
    #allocation4 [shape = 's32[2]{0}', space=sflag, size = 0x8, scoped, tag = 'scoped memory for tpu_custom_call.1']
    #allocation5 [shape = 's32[2]{0}', space=sflag, size = 0x8, scoped, tag = 'scoped memory for tpu_custom_call.1']
    #allocation6 [shape = 'u8[4096]{0}', space=vmem, size = 0x1000, scoped, tag = 'input window, operand 1, single buffered']
    #allocation7 [shape = 's32[1]{0}', space=sflag, size = 0x4, scoped, tag = 'scoped memory for tpu_custom_call.1']
    #allocation8 [shape = 'u8[8192]{0}', space=vmem, size = 0x2000, scoped, tag = 'output window, operand 1']
    #allocation9 [shape = 'u8[1024]{0}', space=vmem, size = 0x400, scoped, tag = 'output window, operand 2']
    #allocation10 [shape = 's32[2]{0}', space=sflag, size = 0x8, scoped, tag = 'scoped memory for tpu_custom_call.1']
    #allocation11 [shape = 'u8[1024]{0}', space=vmem, size = 0x400, scoped, tag = 'output window, operand 3']
    %16 = vsyncpa [#allocation4], 0
    %s17 = scalar_lea.sflag [#allocation4], 1
    %18 = vsyncpa %s17, 0
    %19 = vsyncpa [#allocation7], 0
    %20 = vsyncpa [#allocation5], 0
    %s21 = scalar_lea.sflag [#allocation5], 1
    %22 = vsyncpa %s21, 0
    %23 = vsyncpa [#allocation10], 0
    %s24 = scalar_lea.sflag [#allocation10], 1
    %25 = vsyncpa %s24, 0
    loop: start=0, step=1, limit=4
    $region2: #{tpu_custom_call.1} parent=1 // loop_pre_header
      _
    $region3: #{tpu_custom_call.1} parent=1 // loop_header
      %s27 = sphi 0, %s31
      %p28 = scmp.ge.s32.totalorder %s27, 4
      %s37 = sphi 0, %s39
      %s40 = sphi 0, %s37
      %s41 = sphi 0, %s40
      %s57 = sphi 0, %s41
      %s61 = sphi 0, %s61
      %s63 = sphi 0, %s61
      %s64 = sphi 0, %s63
      %s78 = sphi 0, %s64
      %s82 = sphi 0, %s82
      %s84 = sphi 0, %s82
      %s85 = sphi 0, %s84
      %s99 = sphi 0, %s85
      %s103 = sphi 0, %s103
      %s105 = sphi 0, %s103
      %s106 = sphi 0, %s105
      %s120 = sphi 0, %s106
      %s124 = sphi 0, %s124
      %s126 = sphi 0, %s124
      %s127 = sphi 0, %s126
      %s141 = sphi 0, %s127
      %s147 = sphi 0, %s149
      %s150 = sphi 0, %s147
      %s151 = sphi 0, %s150
      %s167 = sphi 0, %s151
      %s173 = sphi 0, %s175
      %s176 = sphi 0, %s173
      %s177 = sphi 0, %s176
      %s193 = sphi 0, %s177
      %s199 = sphi 0, %s201
      %s202 = sphi 0, %s199
      %s203 = sphi 0, %s202
      %s219 = sphi 0, %s203
      %s225 = sphi 0, %s227
      %s228 = sphi 0, %s225
      %s229 = sphi 0, %s228
      %s245 = sphi 0, %s229
    $region4: #{tpu_custom_call.1} parent=1 // loop_header_branch
      %30 = sbr.rel (%p28) target = $region8
    $region5: #{tpu_custom_call.1} parent=1 // loop_body
      %s32 = ssub.s32 %s27, 1
      %s33 = ssub.s32 %s27, 2
      %s34 = sadd.s32 %s27, 1
      %s35 = ssub.s32 %s27, %s34
      %p36 = scmp.eq.s32.totalorder %s35, 0
      %s38 = sadd.s32 %s37, 1
      %s39 = scalar_select %p36, %s37, %s38
      %p42 = pneg %p36
      %p43 = scmp.eq.s32.totalorder %s27, 1
      %p44 = por %p42, %p43
      %p45 = scmp.ne.s32.totalorder %s37, %s40
      %p46 = scmp.eq.s32.totalorder %s27, 0
      %p47 = por %p45, %p46
      %p48 = scmp.ne.s32.totalorder %s37, %s40
      %p49 = scmp.eq.s32.totalorder %s32, 1
      %p50 = por %p48, %p49
      %p51 = scmp.ne.s32.totalorder %s40, %s41
      %p52 = scmp.eq.s32.totalorder %s32, 0
      %p53 = por %p51, %p52
      %p54 = scmp.ne.s32.totalorder %s40, %s41
      %p55 = scmp.eq.s32.totalorder %s33, 1
      %p56 = por %p54, %p55
      %p58 = scmp.ne.s32.totalorder %s41, %s57
      %p59 = scmp.eq.s32.totalorder %s33, 0
      %p60 = por %p58, %p59
      %s62 = sadd.s32 %s61, 1
      %p65 = scmp.eq.s32.totalorder %s27, 1
      %p66 = scmp.ne.s32.totalorder %s61, %s63
      %p67 = scmp.eq.s32.totalorder %s27, 0
      %p68 = por %p66, %p67
      %p69 = scmp.ne.s32.totalorder %s61, %s63
      %p70 = scmp.eq.s32.totalorder %s32, 1
      %p71 = por %p69, %p70
      %p72 = scmp.ne.s32.totalorder %s63, %s64
      %p73 = scmp.eq.s32.totalorder %s32, 0
      %p74 = por %p72, %p73
      %p75 = scmp.ne.s32.totalorder %s63, %s64
      %p76 = scmp.eq.s32.totalorder %s33, 1
      %p77 = por %p75, %p76
      %p79 = scmp.ne.s32.totalorder %s64, %s78
      %p80 = scmp.eq.s32.totalorder %s33, 0
      %p81 = por %p79, %p80
      %s83 = sadd.s32 %s82, 1
      %p86 = scmp.eq.s32.totalorder %s27, 1
      %p87 = scmp.ne.s32.totalorder %s82, %s84
      %p88 = scmp.eq.s32.totalorder %s27, 0
      %p89 = por %p87, %p88
      %p90 = scmp.ne.s32.totalorder %s82, %s84
      %p91 = scmp.eq.s32.totalorder %s32, 1
      %p92 = por %p90, %p91
      %p93 = scmp.ne.s32.totalorder %s84, %s85
      %p94 = scmp.eq.s32.totalorder %s32, 0
      %p95 = por %p93, %p94
      %p96 = scmp.ne.s32.totalorder %s84, %s85
      %p97 = scmp.eq.s32.totalorder %s33, 1
      %p98 = por %p96, %p97
      %p100 = scmp.ne.s32.totalorder %s85, %s99
      %p101 = scmp.eq.s32.totalorder %s33, 0
      %p102 = por %p100, %p101
      %s104 = sadd.s32 %s103, 1
      %p107 = scmp.eq.s32.totalorder %s27, 1
      %p108 = scmp.ne.s32.totalorder %s103, %s105
      %p109 = scmp.eq.s32.totalorder %s27, 0
      %p110 = por %p108, %p109
      %p111 = scmp.ne.s32.totalorder %s103, %s105
      %p112 = scmp.eq.s32.totalorder %s32, 1
      %p113 = por %p111, %p112
      %p114 = scmp.ne.s32.totalorder %s105, %s106
      %p115 = scmp.eq.s32.totalorder %s32, 0
      %p116 = por %p114, %p115
      %p117 = scmp.ne.s32.totalorder %s105, %s106
      %p118 = scmp.eq.s32.totalorder %s33, 1
      %p119 = por %p117, %p118
      %p121 = scmp.ne.s32.totalorder %s106, %s120
      %p122 = scmp.eq.s32.totalorder %s33, 0
      %p123 = por %p121, %p122
      %s125 = sadd.s32 %s124, 1
      %p128 = scmp.eq.s32.totalorder %s27, 1
      %p129 = scmp.ne.s32.totalorder %s124, %s126
      %p130 = scmp.eq.s32.totalorder %s27, 0
      %p131 = por %p129, %p130
      %p132 = scmp.ne.s32.totalorder %s124, %s126
      %p133 = scmp.eq.s32.totalorder %s32, 1
      %p134 = por %p132, %p133
      %p135 = scmp.ne.s32.totalorder %s126, %s127
      %p136 = scmp.eq.s32.totalorder %s32, 0
      %p137 = por %p135, %p136
      %p138 = scmp.ne.s32.totalorder %s126, %s127
      %p139 = scmp.eq.s32.totalorder %s33, 1
      %p140 = por %p138, %p139
      %p142 = scmp.ne.s32.totalorder %s127, %s141
      %p143 = scmp.eq.s32.totalorder %s33, 0
      %p144 = por %p142, %p143
      %s145 = ssub.s32 %s27, %s34
      %p146 = scmp.eq.s32.totalorder %s145, 0
      %s148 = sadd.s32 %s147, 1
      %s149 = scalar_select %p146, %s147, %s148
      %p152 = pneg %p146
      %p153 = scmp.eq.s32.totalorder %s27, 1
      %p154 = por %p152, %p153
      %p155 = scmp.ne.s32.totalorder %s147, %s150
      %p156 = scmp.eq.s32.totalorder %s27, 0
      %p157 = por %p155, %p156
      %p158 = scmp.ne.s32.totalorder %s147, %s150
      %p159 = scmp.eq.s32.totalorder %s32, 1
      %p160 = por %p158, %p159
      %p161 = scmp.ne.s32.totalorder %s150, %s151
      %p162 = scmp.eq.s32.totalorder %s32, 0
      %p163 = por %p161, %p162
      %p164 = scmp.ne.s32.totalorder %s150, %s151
      %p165 = scmp.eq.s32.totalorder %s33, 1
      %p166 = por %p164, %p165
      %p168 = scmp.ne.s32.totalorder %s151, %s167
      %p169 = scmp.eq.s32.totalorder %s33, 0
      %p170 = por %p168, %p169
      %s171 = ssub.s32 %s27, %s34
      %p172 = scmp.eq.s32.totalorder %s171, 0
      %s174 = sadd.s32 %s173, 1
      %s175 = scalar_select %p172, %s173, %s174
      %p178 = pneg %p172
      %p179 = scmp.eq.s32.totalorder %s27, 1
      %p180 = por %p178, %p179
      %p181 = scmp.ne.s32.totalorder %s173, %s176
      %p182 = scmp.eq.s32.totalorder %s27, 0
      %p183 = por %p181, %p182
      %p184 = scmp.ne.s32.totalorder %s173, %s176
      %p185 = scmp.eq.s32.totalorder %s32, 1
      %p186 = por %p184, %p185
      %p187 = scmp.ne.s32.totalorder %s176, %s177
      %p188 = scmp.eq.s32.totalorder %s32, 0
      %p189 = por %p187, %p188
      %p190 = scmp.ne.s32.totalorder %s176, %s177
      %p191 = scmp.eq.s32.totalorder %s33, 1
      %p192 = por %p190, %p191
      %p194 = scmp.ne.s32.totalorder %s177, %s193
      %p195 = scmp.eq.s32.totalorder %s33, 0
      %p196 = por %p194, %p195
      %s197 = ssub.s32 %s27, %s34
      %p198 = scmp.eq.s32.totalorder %s197, 0
      %s200 = sadd.s32 %s199, 1
      %s201 = scalar_select %p198, %s199, %s200
      %p204 = pneg %p198
      %p205 = scmp.eq.s32.totalorder %s27, 1
      %p206 = por %p204, %p205
      %p207 = scmp.ne.s32.totalorder %s199, %s202
      %p208 = scmp.eq.s32.totalorder %s27, 0
      %p209 = por %p207, %p208
      %p210 = scmp.ne.s32.totalorder %s199, %s202
      %p211 = scmp.eq.s32.totalorder %s32, 1
      %p212 = por %p210, %p211
      %p213 = scmp.ne.s32.totalorder %s202, %s203
      %p214 = scmp.eq.s32.totalorder %s32, 0
      %p215 = por %p213, %p214
      %p216 = scmp.ne.s32.totalorder %s202, %s203
      %p217 = scmp.eq.s32.totalorder %s33, 1
      %p218 = por %p216, %p217
      %p220 = scmp.ne.s32.totalorder %s203, %s219
      %p221 = scmp.eq.s32.totalorder %s33, 0
      %p222 = por %p220, %p221
      %s223 = ssub.s32 %s27, %s34
      %p224 = scmp.eq.s32.totalorder %s223, 0
      %s226 = sadd.s32 %s225, 1
      %s227 = scalar_select %p224, %s225, %s226
      %p230 = pneg %p224
      %p231 = scmp.eq.s32.totalorder %s27, 1
      %p232 = por %p230, %p231
      %p233 = scmp.ne.s32.totalorder %s225, %s228
      %p234 = scmp.eq.s32.totalorder %s27, 0
      %p235 = por %p233, %p234
      %p236 = scmp.ne.s32.totalorder %s225, %s228
      %p237 = scmp.eq.s32.totalorder %s32, 1
      %p238 = por %p236, %p237
      %p239 = scmp.ne.s32.totalorder %s228, %s229
      %p240 = scmp.eq.s32.totalorder %s32, 0
      %p241 = por %p239, %p240
      %p242 = scmp.ne.s32.totalorder %s228, %s229
      %p243 = scmp.eq.s32.totalorder %s33, 1
      %p244 = por %p242, %p243
      %p246 = scmp.ne.s32.totalorder %s229, %s245
      %p247 = scmp.eq.s32.totalorder %s33, 0
      %p248 = por %p246, %p247
      %p249 = scmp.le.s32.totalorder 1, %s27
      %p250 = scmp.lt.s32.totalorder %s27, 3
      %p251 = pnand %p249, %p250
      %p252 = pneg %p251
      // Predicated region
      $region9: #{tpu_custom_call.1} parent=5 // pred_check
        _
      $region10: #{tpu_custom_call.1} parent=5 // pred_check_branch
        %254 = sbr.rel (%p251) target = $region12
      $region11: #{tpu_custom_call.1} parent=5 // pred_region
        %s255 = ssub.s32 %s27, 1
        // Predicated region
        $region13: #{tpu_custom_call.1} parent=11 // pred_check
          %p256 = pneg %p74
        $region14: #{tpu_custom_call.1} parent=11 // pred_check_branch
          %258 = sbr.rel (%p256) target = $region16
        $region15: #{tpu_custom_call.1} parent=11 // pred_region
          %s260 = ssub.s32 128, 128
          %261 = vsyncadd [#allocation7], %s260
          %s262 = sshll.u32 [#allocation6], 4
          %s263 = int_to_ptr.vmem [resolvable:$true] %s262
          %268 = dma.hbm_to_vmem [thread:$0]  %s1, 128, %s263, [#allocation7], 64, 64, 4
        $region16: #{tpu_custom_call.1} parent=11 // pred_fallthru
          _
        // Predicated region
        $region17: #{tpu_custom_call.1} parent=11 // pred_check
          %p269 = pneg %p95
        $region18: #{tpu_custom_call.1} parent=11 // pred_check_branch
          %271 = sbr.rel (%p269) target = $region20
        $region19: #{tpu_custom_call.1} parent=11 // pred_region
          _
        $region20: #{tpu_custom_call.1} parent=11 // pred_fallthru
          _
        // Predicated region
        $region21: #{tpu_custom_call.1} parent=11 // pred_check
          %p272 = pneg %p116
        $region22: #{tpu_custom_call.1} parent=11 // pred_check_branch
          %274 = sbr.rel (%p272) target = $region24
        $region23: #{tpu_custom_call.1} parent=11 // pred_region
          _
        $region24: #{tpu_custom_call.1} parent=11 // pred_fallthru
          _
        // Predicated region
        $region25: #{tpu_custom_call.1} parent=11 // pred_check
          %p275 = pneg %p137
        $region26: #{tpu_custom_call.1} parent=11 // pred_check_branch
          %277 = sbr.rel (%p275) target = $region28
        $region27: #{tpu_custom_call.1} parent=11 // pred_region
          _
        $region28: #{tpu_custom_call.1} parent=11 // pred_fallthru
          _
      $region12: #{tpu_custom_call.1} parent=5 // pred_fallthru
        _
      %p278 = scmp.lt.s32.totalorder %s27, 2
      // Predicated region
      $region29: #{tpu_custom_call.1} parent=5 // pred_check
        %p279 = pneg %p278
      $region30: #{tpu_custom_call.1} parent=5 // pred_check_branch
        %281 = sbr.rel (%p279) target = $region32
      $region31: #{tpu_custom_call.1} parent=5 // pred_region
        // Predicated region
        $region33: #{tpu_custom_call.1} parent=31 // pred_check
          %p282 = pneg %p47
        $region34: #{tpu_custom_call.1} parent=31 // pred_check_branch
          %284 = sbr.rel (%p282) target = $region36
        $region35: #{tpu_custom_call.1} parent=31 // pred_region
          %s285 = sand.u32 %s37, 1
          %s286 = scalar_lea.sflag [#allocation4], %s285
          %s287 = sand.u32 %s37, 1
          %s288 = smul.addr %s287, 8
          %s289 = scalar_lea.vmem [#allocation3], %s288
          %s291 = ssub.s32 128, 128
          %292 = vsyncadd %s286, %s291
          %s293 = smul.addr %s27, 128
          %s294 = scalar_lea.hbm %s0, %s293
          %s296 = sshll.u32 %s289, 4
          %s297 = int_to_ptr.vmem [resolvable:$true] %s296
          %299 = dma.hbm_to_vmem [thread:$0]  %s294, 128, %s297, %s286
        $region36: #{tpu_custom_call.1} parent=31 // pred_fallthru
          _
      $region32: #{tpu_custom_call.1} parent=5 // pred_fallthru
        _
      %p300 = scmp.le.s32.totalorder 1, %s27
      %p301 = scmp.lt.s32.totalorder %s27, 3
      %p302 = pnand %p300, %p301
      %p303 = pneg %p302
      // Predicated region
      $region37: #{tpu_custom_call.1} parent=5 // pred_check
        _
      $region38: #{tpu_custom_call.1} parent=5 // pred_check_branch
        %305 = sbr.rel (%p302) target = $region40
      $region39: #{tpu_custom_call.1} parent=5 // pred_region
        %s306 = ssub.s32 %s27, 1
        %s307 = sand.u32 %s40, 1
        %s308 = scalar_lea.sflag [#allocation4], %s307
        %s309 = sand.u32 %s40, 1
        %s310 = smul.addr %s309, 8
        %s311 = scalar_lea.vmem [#allocation3], %s310
        // Predicated region
        $region41: #{tpu_custom_call.1} parent=39 // pred_check
          %p312 = pneg %p53
        $region42: #{tpu_custom_call.1} parent=39 // pred_check_branch
          %314 = sbr.rel (%p312) target = $region44
        $region43: #{tpu_custom_call.1} parent=39 // pred_region
          %315 = dma.done %s308, 128
        $region44: #{tpu_custom_call.1} parent=39 // pred_fallthru
          _
        // Predicated region
        $region45: #{tpu_custom_call.1} parent=39 // pred_check
          %p316 = pneg %p74
        $region46: #{tpu_custom_call.1} parent=39 // pred_check_branch
          %318 = sbr.rel (%p316) target = $region48
        $region47: #{tpu_custom_call.1} parent=39 // pred_region
          %319 = dma.done [#allocation7], 128
        $region48: #{tpu_custom_call.1} parent=39 // pred_fallthru
          _
        %s320 = sand.u32 %s40, 1
        %s321 = scalar_lea.sflag [#allocation4], %s320
        %s322 = sand.u32 %s40, 1
        %s323 = smul.addr %s322, 8
        %s324 = scalar_lea.vmem [#allocation3], %s323
        %p325 = pneg %p53
        %p326 = pneg %p50
        %p327 = pneg %p74
        %p328 = pneg %p71
        %p329 = pneg %p95
        %p330 = pneg %p92
        %p331 = pneg %p116
        %p332 = pneg %p113
        %p333 = pneg %p137
        %p334 = pneg %p134
        %p335 = pneg %p163
        %p336 = pneg %p160
        %p337 = scmp.lt.s32.totalorder %s32, 1
        %s338 = scalar_select %p337, %s32, 1
        %s339 = smul.addr %s338, 8
        %s340 = scalar_lea.vmem %s5, %s339
        %p341 = pneg %p189
        %p342 = pneg %p186
        %s343 = sand.u32 %s176, 1
        %s344 = scalar_lea.sflag [#allocation5], %s343
        %s345 = sand.u32 %s176, 1
        %s346 = smul.addr %s345, 8
        %s347 = scalar_lea.vmem [#allocation8], %s346
        %p348 = pneg %p215
        %p349 = pneg %p212
        %s350 = sand.u32 %s32, 1
        %s351 = scalar_lea.sflag [#allocation10], %s350
        %s352 = sand.u32 %s202, 1
        %s353 = scalar_lea.vmem [#allocation9], %s352
        %p354 = pneg %p241
        %p355 = pneg %p238
        %s356 = sand.u32 %s32, 1
        %s357 = scalar_lea.sflag [#allocation10], %s356
        %s358 = sand.u32 %s228, 1
        %s359 = scalar_lea.vmem [#allocation11], %s358
        %p360 = scmp.lt.s32.totalorder %s32, 1
        %s361 = scalar_select %p360, %s32, 1
        %s362 = smul.addr %s361, 8
        %s363 = scalar_lea.vmem %s5, %s362
        %v365 = vld [vmem:[%s311] sm:$0xff]
        %v366 = vpack.c.bf16 %v365, %v365
        %v367 = vld [vmem:[#allocation6] sm:$0xf]
        %v368 = vld [vmem:[#allocation6 + $0x4] sm:$0xf]
        %v369 = vld [vmem:[%s2] sm:$0x1]
        %v371 = vlaneseq
        %v372 = vshrl.u32 %v371, 7
        %v373 = vsub.s32 0, %v372
        %v374 = vrot.slane %v369, %v373
        %v378 = vunpack.c.l.b16 %v367
        %v379 = vunpack.c.l.b16 %v368
        %v380 = vpack.c.b16 %v379, %v378
        %vm382 = vcmask 130048
        %v384 = vsel %vm382, %v366, 0
        %386 = vmatprep.subr.bf16.mxu0 0
        %387 = vmatpush1.bf16.msra.mxu0 %v380
        %388 = vmatprep.subr.bf16.mxu0 0
        %389 = vmatpush1.bf16.msra.mxu0 0
        %390 = vmatprep.subr.bf16.mxu0 0
        %391 = vmatpush1.bf16.msra.mxu0 0
        %392 = vmatprep.subr.bf16.mxu0 0
        %393 = vmatpush1.bf16.msra.mxu0 0
        %394 = vmatprep.subr.bf16.mxu0 0
        %395 = vmatpush1.bf16.msra.mxu0 0
        %396 = vmatprep.subr.bf16.mxu0 0
        %397 = vmatpush1.bf16.msra.mxu0 0
        %398 = vmatprep.subr.bf16.mxu0 0
        %399 = vmatpush1.bf16.msra.mxu0 0
        %400 = vmatprep.subr.bf16.mxu0 0
        %401 = vmatpush1.bf16.msra.mxu0 0
        %402 = vmatprep.subr.bf16.mxu0 0
        %403 = vmatpush1.bf16.msra.mxu0 0
        %404 = vmatprep.subr.bf16.mxu0 0
        %405 = vmatpush1.bf16.msra.mxu0 0
        %406 = vmatprep.subr.bf16.mxu0 0
        %407 = vmatpush1.bf16.msra.mxu0 0
        %408 = vmatprep.subr.bf16.mxu0 0
        %409 = vmatpush1.bf16.msra.mxu0 0
        %410 = vmatprep.subr.bf16.mxu0 0
        %411 = vmatpush1.bf16.msra.mxu0 0
        %412 = vmatprep.subr.bf16.mxu0 0
        %413 = vmatpush1.bf16.msra.mxu0 0
        %414 = vmatprep.subr.bf16.mxu0 0
        %415 = vmatpush1.bf16.msra.mxu0 0
        %416 = vmatprep.subr.bf16.mxu0 0
        %417 = vmatpush1.bf16.msra.mxu0 0
        %418 = vmatprep.mubr.bf16.mxu0 0
        %419 = vmatmul.mubr.bf16.gmra.mrb[0].mxu0 %v384
        %v420 = vpop.f32.mrb[0].mxu0
        %v421 = vadd.f32 %v374, %v420
        %v422 = vpop.f32.mrb[0].mxu0
        %v423 = vpop.f32.mrb[0].mxu0
        %v424 = vpop.f32.mrb[0].mxu0
        %425 = vdwg.mxu0
        %v426 = vmul.f32 %v421, 0.5
        %v427 = vtanh.pop %v426
        %v428 = vmul.f32 %v427, 0.5
        %v429 = vadd.f32 %v428, 0.5
        %v430 = vtanh.pop %v421
        %432 = vrot.lane.b32.xlu0 %v430, 64
        %v433 = vpop.permute.xlu0 %432
        %v435 = vmul.f32 %v429, %v433
        %v436 = vtanh.pop %v435
        %438 = vrot.lane.b32.xlu0 %v436, 32
        %v439 = vpop.permute.xlu0 %438
        %v441 = vmul.f32 %v429, %v439
        %443 = vrot.lane.b32.xlu0 %v441, 96
        %v444 = vpop.permute.xlu0 %443
        %vm446 = vcmask 261120
        %447 = vst.msk [vmem:[%s347] sm:$0xff] %vm446, %v444
        %v448 = vld [vmem:[%s3] sm:$0x1]
        %v450 = vlaneseq
        %v451 = vshrl.u32 %v450, 7
        %v452 = vsub.s32 0, %v451
        %v453 = vrot.slane %v448, %v452
        %454 = vrot.lane.b32.xlu0 %v453, 32
        %v455 = vpop.permute.xlu0 %454
        %v457 = vmul.f32 %v441, %v455
        %459 = vrot.lane.b32.xlu0 %v457, 96
        %v460 = vpop.permute.xlu0 %459
        %v462 = vsel %vm446, %v460, 0.0
        %463 = vadd.xlane.f32.xlu0 %v462
        %v464 = vpop.xlane.xlu0 %463
        %v465 = vld [vmem:[#allocation2] sm:$0x1]
        %v467 = vlaneseq
        %v468 = vshrl.u32 %v467, 7
        %v469 = vsub.s32 0, %v468
        %v470 = vrot.slane %v465, %v469
        %v472 = vadd.f32 %v464, %v470
        %vm473 = vcmask 7168
        %474 = vst.msk [vmem:[%s363] sm:$0xff] %vm473, %v472
        %s475 = smul.u32 %s32, 8
        %v476 = vlaneseq
        %v477 = vshrl.u32 %v476, 7
        %v478 = vstv %s475
        %v479 = vadd.s32 %v478, %v477
        %vm480 = vcmp.lt.s32.totalorder %v479, 16
        %v481 = vsel %vm480, 1, 0
        %vm482 = vcmp.eq.s32.totalorder %v481, 1
        %v483 = vsel %vm482, %v441, 0.0
        %v484 = vsel %vm382, %v365, 0.0
        %v485 = vrot.slane %v484, 4
        %v486 = vadd.f32 %v484, %v485
        %v487 = vrot.slane %v486, 2
        %v488 = vadd.f32 %v486, %v487
        %v489 = vrot.slane %v488, 1
        %v490 = vadd.f32 %v488, %v489
        %vm491 = vcmask 122880
        %492 = vst.msk [vmem:[%s353] sm:$0x1] %vm491, %v490
        %vm493 = vcmask 523520
        %v494 = vsel %vm493, %v483, 0.0
        %v495 = vrot.slane %v494, 4
        %v496 = vadd.f32 %v494, %v495
        %v497 = vrot.slane %v496, 2
        %v498 = vadd.f32 %v496, %v497
        %v499 = vrot.slane %v498, 1
        %v500 = vadd.f32 %v498, %v499
        %502 = vrot.lane.b32.xlu0 %v500, 96
        %v503 = vpop.permute.xlu0 %502
        %vm505 = vcmask 253952
        %506 = vst.msk [vmem:[%s359] sm:$0x1] %vm505, %v503
        %p507 = scmp.lt.s32.totalorder %s32, 1
        %s508 = scalar_select %p507, %s32, 1
        %s509 = smul.addr %s508, 8
        %s510 = scalar_lea.vmem %s5, %s509
        %s511 = sand.u32 %s176, 1
        %s512 = scalar_lea.sflag [#allocation5], %s511
        %s513 = sand.u32 %s176, 1
        %s514 = smul.addr %s513, 8
        %s515 = scalar_lea.vmem [#allocation8], %s514
        %s516 = sand.u32 %s32, 1
        %s517 = scalar_lea.sflag [#allocation10], %s516
        %s518 = sand.u32 %s202, 1
        %s519 = scalar_lea.vmem [#allocation9], %s518
        %s520 = sand.u32 %s32, 1
        %s521 = scalar_lea.sflag [#allocation10], %s520
        %s522 = sand.u32 %s228, 1
        %s523 = scalar_lea.vmem [#allocation11], %s522
        // Predicated region
        $region49: #{tpu_custom_call.1} parent=39 // pred_check
          %p524 = pneg %p160
        $region50: #{tpu_custom_call.1} parent=39 // pred_check_branch
          %526 = sbr.rel (%p524) target = $region52
        $region51: #{tpu_custom_call.1} parent=39 // pred_region
          _
        $region52: #{tpu_custom_call.1} parent=39 // pred_fallthru
          _
        // Predicated region
        $region53: #{tpu_custom_call.1} parent=39 // pred_check
          %p527 = pneg %p186
        $region54: #{tpu_custom_call.1} parent=39 // pred_check_branch
          %529 = sbr.rel (%p527) target = $region56
        $region55: #{tpu_custom_call.1} parent=39 // pred_region
          %s531 = ssub.s32 128, 128
          %532 = vsyncadd %s512, %s531
          %s533 = smul.addr %s32, 128
          %s534 = scalar_lea.hbm %s6, %s533
          %s536 = sshll.u32 %s515, 4
          %s537 = int_to_ptr.vmem [resolvable:$true] %s536
          %539 = dma.vmem_to_hbm [thread:$0]  %s537, 128, %s534, %s512
        $region56: #{tpu_custom_call.1} parent=39 // pred_fallthru
          _
        // Predicated region
        $region57: #{tpu_custom_call.1} parent=39 // pred_check
          %p540 = pneg %p212
        $region58: #{tpu_custom_call.1} parent=39 // pred_check_branch
          %542 = sbr.rel (%p540) target = $region60
        $region59: #{tpu_custom_call.1} parent=39 // pred_region
          %s544 = ssub.s32 16, 16
          %545 = vsyncadd %s517, %s544
          %s546 = smul.addr %s32, 16
          %s547 = scalar_lea.hbm %s7, %s546
          %s549 = sshll.u32 %s519, 4
          %s550 = int_to_ptr.vmem [resolvable:$true] %s549
          %552 = dma.vmem_to_hbm [thread:$0]  %s550, 16, %s547, %s517
        $region60: #{tpu_custom_call.1} parent=39 // pred_fallthru
          _
        // Predicated region
        $region61: #{tpu_custom_call.1} parent=39 // pred_check
          %p553 = pneg %p238
        $region62: #{tpu_custom_call.1} parent=39 // pred_check_branch
          %555 = sbr.rel (%p553) target = $region64
        $region63: #{tpu_custom_call.1} parent=39 // pred_region
          %s557 = ssub.s32 16, 16
          %558 = vsyncadd %s521, %s557
          %s559 = smul.addr %s32, 16
          %s560 = scalar_lea.hbm %s8, %s559
          %s562 = sshll.u32 %s523, 4
          %s563 = int_to_ptr.vmem [resolvable:$true] %s562
          %565 = dma.vmem_to_hbm [thread:$0]  %s563, 16, %s560, %s521
        $region64: #{tpu_custom_call.1} parent=39 // pred_fallthru
          _
      $region40: #{tpu_custom_call.1} parent=5 // pred_fallthru
        _
      %p566 = scmp.le.s32.totalorder 2, %s27
      // Predicated region
      $region65: #{tpu_custom_call.1} parent=5 // pred_check
        %p567 = pneg %p566
      $region66: #{tpu_custom_call.1} parent=5 // pred_check_branch
        %569 = sbr.rel (%p567) target = $region68
      $region67: #{tpu_custom_call.1} parent=5 // pred_region
        %s570 = ssub.s32 %s27, 2
        // Predicated region
        $region69: #{tpu_custom_call.1} parent=67 // pred_check
          %p571 = pneg %p166
        $region70: #{tpu_custom_call.1} parent=67 // pred_check_branch
          %573 = sbr.rel (%p571) target = $region72
        $region71: #{tpu_custom_call.1} parent=67 // pred_region
          %p574 = scmp.lt.s32.totalorder %s33, 1
          %s575 = scalar_select %p574, %s33, 1
          %s576 = smul.addr %s575, 8
          %s577 = scalar_lea.vmem %s5, %s576
        $region72: #{tpu_custom_call.1} parent=67 // pred_fallthru
          _
        // Predicated region
        $region73: #{tpu_custom_call.1} parent=67 // pred_check
          %p578 = pneg %p192
        $region74: #{tpu_custom_call.1} parent=67 // pred_check_branch
          %580 = sbr.rel (%p578) target = $region76
        $region75: #{tpu_custom_call.1} parent=67 // pred_region
          %s581 = sand.u32 %s177, 1
          %s582 = scalar_lea.sflag [#allocation5], %s581
          %s583 = sand.u32 %s177, 1
          %s584 = smul.addr %s583, 8
          %s585 = scalar_lea.vmem [#allocation8], %s584
          %586 = dma.done %s582, 128
        $region76: #{tpu_custom_call.1} parent=67 // pred_fallthru
          _
        // Predicated region
        $region77: #{tpu_custom_call.1} parent=67 // pred_check
          %p587 = pneg %p218
        $region78: #{tpu_custom_call.1} parent=67 // pred_check_branch
          %589 = sbr.rel (%p587) target = $region80
        $region79: #{tpu_custom_call.1} parent=67 // pred_region
          %s590 = sand.u32 %s33, 1
          %s591 = scalar_lea.sflag [#allocation10], %s590
          %s592 = sand.u32 %s203, 1
          %s593 = scalar_lea.vmem [#allocation9], %s592
          %594 = dma.done %s591, 16
        $region80: #{tpu_custom_call.1} parent=67 // pred_fallthru
          _
        // Predicated region
        $region81: #{tpu_custom_call.1} parent=67 // pred_check
          %p595 = pneg %p244
        $region82: #{tpu_custom_call.1} parent=67 // pred_check_branch
          %597 = sbr.rel (%p595) target = $region84
        $region83: #{tpu_custom_call.1} parent=67 // pred_region
          %s598 = sand.u32 %s33, 1
          %s599 = scalar_lea.sflag [#allocation10], %s598
          %s600 = sand.u32 %s229, 1
          %s601 = scalar_lea.vmem [#allocation11], %s600
          %602 = dma.done %s599, 16
        $region84: #{tpu_custom_call.1} parent=67 // pred_fallthru
          _
      $region68: #{tpu_custom_call.1} parent=5 // pred_fallthru
        _
    $region6: #{tpu_custom_call.1} parent=1 // loop_footer
      %s31 = sadd.s32 1, %s27
    $region7: #{tpu_custom_call.1} parent=1 // loop_footer_branch
      %26 = sbr.rel target = $region3
    $region8: #{tpu_custom_call.1} parent=1 // loop_exit
      _
    %603 = vsyncpa [#allocation4], 1
    %s604 = scalar_lea.sflag [#allocation4], 1
    %605 = vsyncpa %s604, 1
    %606 = vsyncpa [#allocation7], 1
    %607 = vsyncpa [#allocation5], 1
    %s608 = scalar_lea.sflag [#allocation5], 1
    %609 = vsyncpa %s608, 1
    %610 = vsyncpa [#allocation10], 1
    %s611 = scalar_lea.sflag [#allocation10], 1
    %612 = vsyncpa %s611, 1

// kernel: tpu_custom_call.1
$region0: #{tpu_custom_call.1}
  #allocation0 [shape = 'u32[]', space=smem, size = 0x4, offset = 0x4, fixed_abs, tag = 'smem constant byte address 0x4 - core index']
  #allocation1 [shape = 'u32[144,128]{1,0:T(1,128)}', space=vmem, size = 0x12000, scoped, tag = 'internal scratch']
  #allocation2 [shape = 'f32[1,1]{1,0:T(1,128)S(1)}', space=vmem, size = 0x200, scoped, tag = 'scoped memory for tpu_custom_call.1']
  %s0 = inlined_call_operand.hbm [shape: f32[16,16], index: 0, kind: input, shape index: {}]
  %s1 = inlined_call_operand.hbm [shape: bf16[16,96], index: 1, kind: input, shape index: {}]
  %s2 = inlined_call_operand.vmem [shape: f32[1,96], index: 2, kind: input, shape index: {}]
  %s3 = inlined_call_operand.vmem [shape: f32[1,32], index: 3, kind: input, shape index: {}]
  %s4 = inlined_call_operand.<no memory space> [shape: f32[1,1], index: 4, kind: input, shape index: {}]
  %s5 = inlined_call_operand.vmem [shape: f32[16,1], index: 5, kind: output, shape index: {0}]
  %s6 = inlined_call_operand.hbm [shape: f32[16,32], index: 6, kind: output, shape index: {1}]
  %s7 = inlined_call_operand.hbm [shape: f32[2,1,16], index: 7, kind: output, shape index: {2}]
  %s8 = inlined_call_operand.hbm [shape: f32[2,1,32], index: 8, kind: output, shape index: {3}]
  %9 = xla_tuple %s5, %s6, %s7, %s8
  %s10 = sld [smem:[#allocation0]]
  $region85: #{tpu_custom_call.1} parent=0
    _
  %s12 = ssub.s32 1, %s10
  %s13 = scalar_select 0, %s12, %s10
  %v14 = vstv %s4
  %15 = vst [vmem:[#allocation2] sm:$0x1] %v14
  $region1: #{tpu_custom_call.1} parent=0
    #allocation3 [shape = 'u8[8192]{0}', space=vmem, size = 0x2000, scoped, tag = 'input window, operand 0']
    #allocation4 [shape = 's32[2]{0}', space=sflag, size = 0x8, scoped, tag = 'scoped memory for tpu_custom_call.1']
    #allocation5 [shape = 's32[2]{0}', space=sflag, size = 0x8, scoped, tag = 'scoped memory for tpu_custom_call.1']
    #allocation6 [shape = 'u8[4096]{0}', space=vmem, size = 0x1000, scoped, tag = 'input window, operand 1, single buffered']
    #allocation7 [shape = 's32[1]{0}', space=sflag, size = 0x4, scoped, tag = 'scoped memory for tpu_custom_call.1']
    #allocation8 [shape = 'u8[8192]{0}', space=vmem, size = 0x2000, scoped, tag = 'output window, operand 1']
    #allocation9 [shape = 'u8[1024]{0}', space=vmem, size = 0x400, scoped, tag = 'output window, operand 2']
    #allocation10 [shape = 's32[2]{0}', space=sflag, size = 0x8, scoped, tag = 'scoped memory for tpu_custom_call.1']
    #allocation11 [shape = 'u8[1024]{0}', space=vmem, size = 0x400, scoped, tag = 'output window, operand 3']
    %16 = vsyncpa [#allocation4], 0
    %s17 = scalar_lea.sflag [#allocation4], 1
    %18 = vsyncpa %s17, 0
    %19 = vsyncpa [#allocation7], 0
    %20 = vsyncpa [#allocation5], 0
    %s21 = scalar_lea.sflag [#allocation5], 1
    %22 = vsyncpa %s21, 0
    %23 = vsyncpa [#allocation10], 0
    %s24 = scalar_lea.sflag [#allocation10], 1
    %25 = vsyncpa %s24, 0
    loop: start=0, step=1, limit=4
    $region2: #{tpu_custom_call.1} parent=1 // loop_pre_header
      _
    $region3: #{tpu_custom_call.1} parent=1 // loop_header
      %s27 = sphi 0, %s31
      %p28 = scmp.ge.s32.totalorder %s27, 4
      %s37 = sphi 0, %s39
      %s40 = sphi 0, %s37
      %s41 = sphi 0, %s40
      %s57 = sphi 0, %s41
      %s61 = sphi 0, %s61
      %s63 = sphi 0, %s61
      %s64 = sphi 0, %s63
      %s78 = sphi 0, %s64
      %s82 = sphi 0, %s82
      %s84 = sphi 0, %s82
      %s85 = sphi 0, %s84
      %s99 = sphi 0, %s85
      %s103 = sphi 0, %s103
      %s105 = sphi 0, %s103
      %s106 = sphi 0, %s105
      %s120 = sphi 0, %s106
      %s124 = sphi 0, %s124
      %s126 = sphi 0, %s124
      %s127 = sphi 0, %s126
      %s141 = sphi 0, %s127
      %s147 = sphi 0, %s149
      %s150 = sphi 0, %s147
      %s151 = sphi 0, %s150
      %s167 = sphi 0, %s151
      %s173 = sphi 0, %s175
      %s176 = sphi 0, %s173
      %s177 = sphi 0, %s176
      %s193 = sphi 0, %s177
      %s199 = sphi 0, %s201
      %s202 = sphi 0, %s199
      %s203 = sphi 0, %s202
      %s219 = sphi 0, %s203
      %s225 = sphi 0, %s227
      %s228 = sphi 0, %s225
      %s229 = sphi 0, %s228
      %s245 = sphi 0, %s229
    $region4: #{tpu_custom_call.1} parent=1 // loop_header_branch
      %30 = sbr.rel (%p28) target = $region8
    $region5: #{tpu_custom_call.1} parent=1 // loop_body
      %s32 = ssub.s32 %s27, 1
      %s33 = ssub.s32 %s27, 2
      %s34 = sadd.s32 %s27, 1
      %s35 = ssub.s32 %s27, %s34
      %p36 = scmp.eq.s32.totalorder %s35, 0
      %s38 = sadd.s32 %s37, 1
      %s39 = scalar_select %p36, %s37, %s38
      %p42 = pneg %p36
      %p43 = scmp.eq.s32.totalorder %s27, 1
      %p44 = por %p42, %p43
      %p45 = scmp.ne.s32.totalorder %s37, %s40
      %p46 = scmp.eq.s32.totalorder %s27, 0
      %p47 = por %p45, %p46
      %p48 = scmp.ne.s32.totalorder %s37, %s40
      %p49 = scmp.eq.s32.totalorder %s32, 1
      %p50 = por %p48, %p49
      %p51 = scmp.ne.s32.totalorder %s40, %s41
      %p52 = scmp.eq.s32.totalorder %s32, 0
      %p53 = por %p51, %p52
      %p54 = scmp.ne.s32.totalorder %s40, %s41
      %p55 = scmp.eq.s32.totalorder %s33, 1
      %p56 = por %p54, %p55
      %p58 = scmp.ne.s32.totalorder %s41, %s57
      %p59 = scmp.eq.s32.totalorder %s33, 0
      %p60 = por %p58, %p59
      %s62 = sadd.s32 %s61, 1
      %p65 = scmp.eq.s32.totalorder %s27, 1
      %p66 = scmp.ne.s32.totalorder %s61, %s63
      %p67 = scmp.eq.s32.totalorder %s27, 0
      %p68 = por %p66, %p67
      %p69 = scmp.ne.s32.totalorder %s61, %s63
      %p70 = scmp.eq.s32.totalorder %s32, 1
      %p71 = por %p69, %p70
      %p72 = scmp.ne.s32.totalorder %s63, %s64
      %p73 = scmp.eq.s32.totalorder %s32, 0
      %p74 = por %p72, %p73
      %p75 = scmp.ne.s32.totalorder %s63, %s64
      %p76 = scmp.eq.s32.totalorder %s33, 1
      %p77 = por %p75, %p76
      %p79 = scmp.ne.s32.totalorder %s64, %s78
      %p80 = scmp.eq.s32.totalorder %s33, 0
      %p81 = por %p79, %p80
      %s83 = sadd.s32 %s82, 1
      %p86 = scmp.eq.s32.totalorder %s27, 1
      %p87 = scmp.ne.s32.totalorder %s82, %s84
      %p88 = scmp.eq.s32.totalorder %s27, 0
      %p89 = por %p87, %p88
      %p90 = scmp.ne.s32.totalorder %s82, %s84
      %p91 = scmp.eq.s32.totalorder %s32, 1
      %p92 = por %p90, %p91
      %p93 = scmp.ne.s32.totalorder %s84, %s85
      %p94 = scmp.eq.s32.totalorder %s32, 0
      %p95 = por %p93, %p94
      %p96 = scmp.ne.s32.totalorder %s84, %s85
      %p97 = scmp.eq.s32.totalorder %s33, 1
      %p98 = por %p96, %p97
      %p100 = scmp.ne.s32.totalorder %s85, %s99
      %p101 = scmp.eq.s32.totalorder %s33, 0
      %p102 = por %p100, %p101
      %s104 = sadd.s32 %s103, 1
      %p107 = scmp.eq.s32.totalorder %s27, 1
      %p108 = scmp.ne.s32.totalorder %s103, %s105
      %p109 = scmp.eq.s32.totalorder %s27, 0
      %p110 = por %p108, %p109
      %p111 = scmp.ne.s32.totalorder %s103, %s105
      %p112 = scmp.eq.s32.totalorder %s32, 1
      %p113 = por %p111, %p112
      %p114 = scmp.ne.s32.totalorder %s105, %s106
      %p115 = scmp.eq.s32.totalorder %s32, 0
      %p116 = por %p114, %p115
      %p117 = scmp.ne.s32.totalorder %s105, %s106
      %p118 = scmp.eq.s32.totalorder %s33, 1
      %p119 = por %p117, %p118
      %p121 = scmp.ne.s32.totalorder %s106, %s120
      %p122 = scmp.eq.s32.totalorder %s33, 0
      %p123 = por %p121, %p122
      %s125 = sadd.s32 %s124, 1
      %p128 = scmp.eq.s32.totalorder %s27, 1
      %p129 = scmp.ne.s32.totalorder %s124, %s126
      %p130 = scmp.eq.s32.totalorder %s27, 0
      %p131 = por %p129, %p130
      %p132 = scmp.ne.s32.totalorder %s124, %s126
      %p133 = scmp.eq.s32.totalorder %s32, 1
      %p134 = por %p132, %p133
      %p135 = scmp.ne.s32.totalorder %s126, %s127
      %p136 = scmp.eq.s32.totalorder %s32, 0
      %p137 = por %p135, %p136
      %p138 = scmp.ne.s32.totalorder %s126, %s127
      %p139 = scmp.eq.s32.totalorder %s33, 1
      %p140 = por %p138, %p139
      %p142 = scmp.ne.s32.totalorder %s127, %s141
      %p143 = scmp.eq.s32.totalorder %s33, 0
      %p144 = por %p142, %p143
      %s145 = ssub.s32 %s27, %s34
      %p146 = scmp.eq.s32.totalorder %s145, 0
      %s148 = sadd.s32 %s147, 1
      %s149 = scalar_select %p146, %s147, %s148
      %p152 = pneg %p146
      %p153 = scmp.eq.s32.totalorder %s27, 1
      %p154 = por %p152, %p153
      %p155 = scmp.ne.s32.totalorder %s147, %s150
      %p156 = scmp.eq.s32.totalorder %s27, 0
      %p157 = por %p155, %p156
      %p158 = scmp.ne.s32.totalorder %s147, %s150
      %p159 = scmp.eq.s32.totalorder %s32, 1
      %p160 = por %p158, %p159
      %p161 = scmp.ne.s32.totalorder %s150, %s151
      %p162 = scmp.eq.s32.totalorder %s32, 0
      %p163 = por %p161, %p162
      %p164 = scmp.ne.s32.totalorder %s150, %s151
      %p165 = scmp.eq.s32.totalorder %s33, 1
      %p166 = por %p164, %p165
      %p168 = scmp.ne.s32.totalorder %s151, %s167
      %p169 = scmp.eq.s32.totalorder %s33, 0
      %p170 = por %p168, %p169
      %s171 = ssub.s32 %s27, %s34
      %p172 = scmp.eq.s32.totalorder %s171, 0
      %s174 = sadd.s32 %s173, 1
      %s175 = scalar_select %p172, %s173, %s174
      %p178 = pneg %p172
      %p179 = scmp.eq.s32.totalorder %s27, 1
      %p180 = por %p178, %p179
      %p181 = scmp.ne.s32.totalorder %s173, %s176
      %p182 = scmp.eq.s32.totalorder %s27, 0
      %p183 = por %p181, %p182
      %p184 = scmp.ne.s32.totalorder %s173, %s176
      %p185 = scmp.eq.s32.totalorder %s32, 1
      %p186 = por %p184, %p185
      %p187 = scmp.ne.s32.totalorder %s176, %s177
      %p188 = scmp.eq.s32.totalorder %s32, 0
      %p189 = por %p187, %p188
      %p190 = scmp.ne.s32.totalorder %s176, %s177
      %p191 = scmp.eq.s32.totalorder %s33, 1
      %p192 = por %p190, %p191
      %p194 = scmp.ne.s32.totalorder %s177, %s193
      %p195 = scmp.eq.s32.totalorder %s33, 0
      %p196 = por %p194, %p195
      %s197 = ssub.s32 %s27, %s34
      %p198 = scmp.eq.s32.totalorder %s197, 0
      %s200 = sadd.s32 %s199, 1
      %s201 = scalar_select %p198, %s199, %s200
      %p204 = pneg %p198
      %p205 = scmp.eq.s32.totalorder %s27, 1
      %p206 = por %p204, %p205
      %p207 = scmp.ne.s32.totalorder %s199, %s202
      %p208 = scmp.eq.s32.totalorder %s27, 0
      %p209 = por %p207, %p208
      %p210 = scmp.ne.s32.totalorder %s199, %s202
      %p211 = scmp.eq.s32.totalorder %s32, 1
      %p212 = por %p210, %p211
      %p213 = scmp.ne.s32.totalorder %s202, %s203
      %p214 = scmp.eq.s32.totalorder %s32, 0
      %p215 = por %p213, %p214
      %p216 = scmp.ne.s32.totalorder %s202, %s203
      %p217 = scmp.eq.s32.totalorder %s33, 1
      %p218 = por %p216, %p217
      %p220 = scmp.ne.s32.totalorder %s203, %s219
      %p221 = scmp.eq.s32.totalorder %s33, 0
      %p222 = por %p220, %p221
      %s223 = ssub.s32 %s27, %s34
      %p224 = scmp.eq.s32.totalorder %s223, 0
      %s226 = sadd.s32 %s225, 1
      %s227 = scalar_select %p224, %s225, %s226
      %p230 = pneg %p224
      %p231 = scmp.eq.s32.totalorder %s27, 1
      %p232 = por %p230, %p231
      %p233 = scmp.ne.s32.totalorder %s225, %s228
      %p234 = scmp.eq.s32.totalorder %s27, 0
      %p235 = por %p233, %p234
      %p236 = scmp.ne.s32.totalorder %s225, %s228
      %p237 = scmp.eq.s32.totalorder %s32, 1
      %p238 = por %p236, %p237
      %p239 = scmp.ne.s32.totalorder %s228, %s229
      %p240 = scmp.eq.s32.totalorder %s32, 0
      %p241 = por %p239, %p240
      %p242 = scmp.ne.s32.totalorder %s228, %s229
      %p243 = scmp.eq.s32.totalorder %s33, 1
      %p244 = por %p242, %p243
      %p246 = scmp.ne.s32.totalorder %s229, %s245
      %p247 = scmp.eq.s32.totalorder %s33, 0
      %p248 = por %p246, %p247
      %p249 = scmp.le.s32.totalorder 1, %s27
      %p250 = scmp.lt.s32.totalorder %s27, 3
      %p251 = pnand %p249, %p250
      %p252 = pneg %p251
      // Predicated region
      $region9: #{tpu_custom_call.1} parent=5 // pred_check
        _
      $region10: #{tpu_custom_call.1} parent=5 // pred_check_branch
        %254 = sbr.rel (%p251) target = $region12
      $region11: #{tpu_custom_call.1} parent=5 // pred_region
        %s255 = ssub.s32 %s27, 1
        // Predicated region
        $region13: #{tpu_custom_call.1} parent=11 // pred_check
          %p256 = pneg %p74
        $region14: #{tpu_custom_call.1} parent=11 // pred_check_branch
          %258 = sbr.rel (%p256) target = $region16
        $region15: #{tpu_custom_call.1} parent=11 // pred_region
          %s260 = ssub.s32 128, 128
          %261 = vsyncadd [#allocation7], %s260
          %s262 = sshll.u32 [#allocation6], 4
          %s263 = int_to_ptr.vmem [resolvable:$true] %s262
          %268 = dma.hbm_to_vmem [thread:$0]  %s1, 128, %s263, [#allocation7], 64, 64, 4
        $region16: #{tpu_custom_call.1} parent=11 // pred_fallthru
          _
        // Predicated region
        $region17: #{tpu_custom_call.1} parent=11 // pred_check
          %p269 = pneg %p95
        $region18: #{tpu_custom_call.1} parent=11 // pred_check_branch
          %271 = sbr.rel (%p269) target = $region20
        $region19: #{tpu_custom_call.1} parent=11 // pred_region
          _
        $region20: #{tpu_custom_call.1} parent=11 // pred_fallthru
          _
        // Predicated region
        $region21: #{tpu_custom_call.1} parent=11 // pred_check
          %p272 = pneg %p116
        $region22: #{tpu_custom_call.1} parent=11 // pred_check_branch
          %274 = sbr.rel (%p272) target = $region24
        $region23: #{tpu_custom_call.1} parent=11 // pred_region
          _
        $region24: #{tpu_custom_call.1} parent=11 // pred_fallthru
          _
        // Predicated region
        $region25: #{tpu_custom_call.1} parent=11 // pred_check
          %p275 = pneg %p137
        $region26: #{tpu_custom_call.1} parent=11 // pred_check_branch
          %277 = sbr.rel (%p275) target = $region28
        $region27: #{tpu_custom_call.1} parent=11 // pred_region
          _
        $region28: #{tpu_custom_call.1} parent=11 // pred_fallthru
          _
      $region12: #{tpu_custom_call.1} parent=5 // pred_fallthru
        _
      %p278 = scmp.lt.s32.totalorder %s27, 2
      // Predicated region
      $region29: #{tpu_custom_call.1} parent=5 // pred_check
        %p279 = pneg %p278
      $region30: #{tpu_custom_call.1} parent=5 // pred_check_branch
        %281 = sbr.rel (%p279) target = $region32
      $region31: #{tpu_custom_call.1} parent=5 // pred_region
        // Predicated region
        $region33: #{tpu_custom_call.1} parent=31 // pred_check
          %p282 = pneg %p47
        $region34: #{tpu_custom_call.1} parent=31 // pred_check_branch
          %284 = sbr.rel (%p282) target = $region36
        $region35: #{tpu_custom_call.1} parent=31 // pred_region
          %s285 = sand.u32 %s37, 1
          %s286 = scalar_lea.sflag [#allocation4], %s285
          %s287 = sand.u32 %s37, 1
          %s288 = smul.addr %s287, 8
          %s289 = scalar_lea.vmem [#allocation3], %s288
          %s291 = ssub.s32 128, 128
          %292 = vsyncadd %s286, %s291
          %s293 = smul.addr %s27, 128
          %s294 = scalar_lea.hbm %s0, %s293
          %s296 = sshll.u32 %s289, 4
          %s297 = int_to_ptr.vmem [resolvable:$true] %s296
          %299 = dma.hbm_to_vmem [thread:$0]  %s294, 128, %s297, %s286
        $region36: #{tpu_custom_call.1} parent=31 // pred_fallthru
          _
      $region32: #{tpu_custom_call.1} parent=5 // pred_fallthru
        _
      %p300 = scmp.le.s32.totalorder 1, %s27
      %p301 = scmp.lt.s32.totalorder %s27, 3
      %p302 = pnand %p300, %p301
      %p303 = pneg %p302
      // Predicated region
      $region37: #{tpu_custom_call.1} parent=5 // pred_check
        _
      $region38: #{tpu_custom_call.1} parent=5 // pred_check_branch
        %305 = sbr.rel (%p302) target = $region40
      $region39: #{tpu_custom_call.1} parent=5 // pred_region
        %s306 = ssub.s32 %s27, 1
        %s307 = sand.u32 %s40, 1
        %s308 = scalar_lea.sflag [#allocation4], %s307
        %s309 = sand.u32 %s40, 1
        %s310 = smul.addr %s309, 8
        %s311 = scalar_lea.vmem [#allocation3], %s310
        // Predicated region
        $region41: #{tpu_custom_call.1} parent=39 // pred_check
          %p312 = pneg %p53
        $region42: #{tpu_custom_call.1} parent=39 // pred_check_branch
          %314 = sbr.rel (%p312) target = $region44
        $region43: #{tpu_custom_call.1} parent=39 // pred_region
          %315 = dma.done %s308, 128
        $region44: #{tpu_custom_call.1} parent=39 // pred_fallthru
          _
        // Predicated region
        $region45: #{tpu_custom_call.1} parent=39 // pred_check
          %p316 = pneg %p74
        $region46: #{tpu_custom_call.1} parent=39 // pred_check_branch
          %318 = sbr.rel (%p316) target = $region48
        $region47: #{tpu_custom_call.1} parent=39 // pred_region
          %319 = dma.done [#allocation7], 128
        $region48: #{tpu_custom_call.1} parent=39 // pred_fallthru
          _
        %s320 = sand.u32 %s40, 1
        %s321 = scalar_lea.sflag [#allocation4], %s320
        %s322 = sand.u32 %s40, 1
        %s323 = smul.addr %s322, 8
        %s324 = scalar_lea.vmem [#allocation3], %s323
        %p325 = pneg %p53
        %p326 = pneg %p50
        %p327 = pneg %p74
        %p328 = pneg %p71
        %p329 = pneg %p95
        %p330 = pneg %p92
        %p331 = pneg %p116
        %p332 = pneg %p113
        %p333 = pneg %p137
        %p334 = pneg %p134
        %p335 = pneg %p163
        %p336 = pneg %p160
        %p337 = scmp.lt.s32.totalorder %s32, 1
        %s338 = scalar_select %p337, %s32, 1
        %s339 = smul.addr %s338, 8
        %s340 = scalar_lea.vmem %s5, %s339
        %p341 = pneg %p189
        %p342 = pneg %p186
        %s343 = sand.u32 %s176, 1
        %s344 = scalar_lea.sflag [#allocation5], %s343
        %s345 = sand.u32 %s176, 1
        %s346 = smul.addr %s345, 8
        %s347 = scalar_lea.vmem [#allocation8], %s346
        %p348 = pneg %p215
        %p349 = pneg %p212
        %s350 = sand.u32 %s32, 1
        %s351 = scalar_lea.sflag [#allocation10], %s350
        %s352 = sand.u32 %s202, 1
        %s353 = scalar_lea.vmem [#allocation9], %s352
        %p354 = pneg %p241
        %p355 = pneg %p238
        %s356 = sand.u32 %s32, 1
        %s357 = scalar_lea.sflag [#allocation10], %s356
        %s358 = sand.u32 %s228, 1
        %s359 = scalar_lea.vmem [#allocation11], %s358
        %p360 = scmp.lt.s32.totalorder %s32, 1
        %s361 = scalar_select %p360, %s32, 1
        %s362 = smul.addr %s361, 8
        %s363 = scalar_lea.vmem %s5, %s362
        %v365 = vld [vmem:[%s311] sm:$0xff]
        %v366 = vpack.c.bf16 %v365, %v365
        %v367 = vld [vmem:[#allocation6] sm:$0xf]
        %v368 = vld [vmem:[#allocation6 + $0x4] sm:$0xf]
        %v369 = vld [vmem:[%s2] sm:$0x1]
        %v371 = vlaneseq
        %v372 = vshrl.u32 %v371, 7
        %v373 = vsub.s32 0, %v372
        %v374 = vrot.slane %v369, %v373
        %v378 = vunpack.c.l.b16 %v367
        %v379 = vunpack.c.l.b16 %v368
        %v380 = vpack.c.b16 %v379, %v378
        %vm382 = vcmask 130048
        %v384 = vsel %vm382, %v366, 0
        %386 = vmatprep.subr.bf16.mxu0 0
        %387 = vmatpush1.bf16.msra.mxu0 %v380
        %388 = vmatprep.subr.bf16.mxu0 0
        %389 = vmatpush1.bf16.msra.mxu0 0
        %390 = vmatprep.subr.bf16.mxu0 0
        %391 = vmatpush1.bf16.msra.mxu0 0
        %392 = vmatprep.subr.bf16.mxu0 0
        %393 = vmatpush1.bf16.msra.mxu0 0
        %394 = vmatprep.subr.bf16.mxu0 0
        %395 = vmatpush1.bf16.msra.mxu0 0
        %396 = vmatprep.subr.bf16.mxu0 0
        %397 = vmatpush1.bf16.msra.mxu0 0
        %398 = vmatprep.subr.bf16.mxu0 0
        %399 = vmatpush1.bf16.msra.mxu0 0
        %400 = vmatprep.subr.bf16.mxu0 0
        %401 = vmatpush1.bf16.msra.mxu0 0
        %402 = vmatprep.subr.bf16.mxu0 0
        %403 = vmatpush1.bf16.msra.mxu0 0
        %404 = vmatprep.subr.bf16.mxu0 0
        %405 = vmatpush1.bf16.msra.mxu0 0
        %406 = vmatprep.subr.bf16.mxu0 0
        %407 = vmatpush1.bf16.msra.mxu0 0
        %408 = vmatprep.subr.bf16.mxu0 0
        %409 = vmatpush1.bf16.msra.mxu0 0
        %410 = vmatprep.subr.bf16.mxu0 0
        %411 = vmatpush1.bf16.msra.mxu0 0
        %412 = vmatprep.subr.bf16.mxu0 0
        %413 = vmatpush1.bf16.msra.mxu0 0
        %414 = vmatprep.subr.bf16.mxu0 0
        %415 = vmatpush1.bf16.msra.mxu0 0
        %416 = vmatprep.subr.bf16.mxu0 0
        %417 = vmatpush1.bf16.msra.mxu0 0
        %418 = vmatprep.mubr.bf16.mxu0 0
        %419 = vmatmul.mubr.bf16.gmra.mrb[0].mxu0 %v384
        %v420 = vpop.f32.mrb[0].mxu0
        %v421 = vadd.f32 %v374, %v420
        %v422 = vpop.f32.mrb[0].mxu0
        %v423 = vpop.f32.mrb[0].mxu0
        %v424 = vpop.f32.mrb[0].mxu0
        %425 = vdwg.mxu0
        %v426 = vmul.f32 %v421, 0.5
        %v427 = vtanh.pop %v426
        %v428 = vmul.f32 %v427, 0.5
        %v429 = vadd.f32 %v428, 0.5
        %v430 = vtanh.pop %v421
        %432 = vrot.lane.b32.xlu0 %v430, 64
        %v433 = vpop.permute.xlu0 %432
        %v435 = vmul.f32 %v429, %v433
        %v436 = vtanh.pop %v435
        %438 = vrot.lane.b32.xlu0 %v436, 32
        %v439 = vpop.permute.xlu0 %438
        %v441 = vmul.f32 %v429, %v439
        %443 = vrot.lane.b32.xlu0 %v441, 96
        %v444 = vpop.permute.xlu0 %443
        %vm446 = vcmask 261120
        %447 = vst.msk [vmem:[%s347] sm:$0xff] %vm446, %v444
        %v448 = vld [vmem:[%s3] sm:$0x1]
        %v450 = vlaneseq
        %v451 = vshrl.u32 %v450, 7
        %v452 = vsub.s32 0, %v451
        %v453 = vrot.slane %v448, %v452
        %454 = vrot.lane.b32.xlu0 %v453, 32
        %v455 = vpop.permute.xlu0 %454
        %v457 = vmul.f32 %v441, %v455
        %459 = vrot.lane.b32.xlu0 %v457, 96
        %v460 = vpop.permute.xlu0 %459
        %v462 = vsel %vm446, %v460, 0.0
        %463 = vadd.xlane.f32.xlu0 %v462
        %v464 = vpop.xlane.xlu0 %463
        %v465 = vld [vmem:[#allocation2] sm:$0x1]
        %v467 = vlaneseq
        %v468 = vshrl.u32 %v467, 7
        %v469 = vsub.s32 0, %v468
        %v470 = vrot.slane %v465, %v469
        %v472 = vadd.f32 %v464, %v470
        %vm473 = vcmask 7168
        %474 = vst.msk [vmem:[%s363] sm:$0xff] %vm473, %v472
        %s475 = smul.u32 %s32, 8
        %v476 = vlaneseq
        %v477 = vshrl.u32 %v476, 7
        %v478 = vstv %s475
        %v479 = vadd.s32 %v478, %v477
        %vm480 = vcmp.lt.s32.totalorder %v479, 16
        %v481 = vsel %vm480, 1, 0
        %vm482 = vcmp.eq.s32.totalorder %v481, 1
        %v483 = vsel %vm482, %v441, 0.0
        %v484 = vsel %vm382, %v365, 0.0
        %v485 = vrot.slane %v484, 4
        %v486 = vadd.f32 %v484, %v485
        %v487 = vrot.slane %v486, 2
        %v488 = vadd.f32 %v486, %v487
        %v489 = vrot.slane %v488, 1
        %v490 = vadd.f32 %v488, %v489
        %vm491 = vcmask 122880
        %492 = vst.msk [vmem:[%s353] sm:$0x1] %vm491, %v490
        %vm493 = vcmask 523520
        %v494 = vsel %vm493, %v483, 0.0
        %v495 = vrot.slane %v494, 4
        %v496 = vadd.f32 %v494, %v495
        %v497 = vrot.slane %v496, 2
        %v498 = vadd.f32 %v496, %v497
        %v499 = vrot.slane %v498, 1
        %v500 = vadd.f32 %v498, %v499
        %502 = vrot.lane.b32.xlu0 %v500, 96
        %v503 = vpop.permute.xlu0 %502
        %vm505 = vcmask 253952
        %506 = vst.msk [vmem:[%s359] sm:$0x1] %vm505, %v503
        %p507 = scmp.lt.s32.totalorder %s32, 1
        %s508 = scalar_select %p507, %s32, 1
        %s509 = smul.addr %s508, 8
        %s510 = scalar_lea.vmem %s5, %s509
        %s511 = sand.u32 %s176, 1
        %s512 = scalar_lea.sflag [#allocation5], %s511
        %s513 = sand.u32 %s176, 1
        %s514 = smul.addr %s513, 8
        %s515 = scalar_lea.vmem [#allocation8], %s514
        %s516 = sand.u32 %s32, 1
        %s517 = scalar_lea.sflag [#allocation10], %s516
        %s518 = sand.u32 %s202, 1
        %s519 = scalar_lea.vmem [#allocation9], %s518
        %s520 = sand.u32 %s32, 1
        %s521 = scalar_lea.sflag [#allocation10], %s520
        %s522 = sand.u32 %s228, 1
        %s523 = scalar_lea.vmem [#allocation11], %s522
        // Predicated region
        $region49: #{tpu_custom_call.1} parent=39 // pred_check
          %p524 = pneg %p160
        $region50: #{tpu_custom_call.1} parent=39 // pred_check_branch
          %526 = sbr.rel (%p524) target = $region52
        $region51: #{tpu_custom_call.1} parent=39 // pred_region
          _
        $region52: #{tpu_custom_call.1} parent=39 // pred_fallthru
          _
        // Predicated region
        $region53: #{tpu_custom_call.1} parent=39 // pred_check
          %p527 = pneg %p186
        $region54: #{tpu_custom_call.1} parent=39 // pred_check_branch
          %529 = sbr.rel (%p527) target = $region56
        $region55: #{tpu_custom_call.1} parent=39 // pred_region
          %s531 = ssub.s32 128, 128
          %532 = vsyncadd %s512, %s531
          %s533 = smul.addr %s32, 128
          %s534 = scalar_lea.hbm %s6, %s533
          %s536 = sshll.u32 %s515, 4
          %s537 = int_to_ptr.vmem [resolvable:$true] %s536
          %539 = dma.vmem_to_hbm [thread:$0]  %s537, 128, %s534, %s512
        $region56: #{tpu_custom_call.1} parent=39 // pred_fallthru
          _
        // Predicated region
        $region57: #{tpu_custom_call.1} parent=39 // pred_check
          %p540 = pneg %p212
        $region58: #{tpu_custom_call.1} parent=39 // pred_check_branch
          %542 = sbr.rel (%p540) target = $region60
        $region59: #{tpu_custom_call.1} parent=39 // pred_region
          %s544 = ssub.s32 16, 16
          %545 = vsyncadd %s517, %s544
          %s546 = smul.addr %s32, 16
          %s547 = scalar_lea.hbm %s7, %s546
          %s549 = sshll.u32 %s519, 4
          %s550 = int_to_ptr.vmem [resolvable:$true] %s549
          %552 = dma.vmem_to_hbm [thread:$0]  %s550, 16, %s547, %s517
        $region60: #{tpu_custom_call.1} parent=39 // pred_fallthru
          _
        // Predicated region
        $region61: #{tpu_custom_call.1} parent=39 // pred_check
          %p553 = pneg %p238
        $region62: #{tpu_custom_call.1} parent=39 // pred_check_branch
          %555 = sbr.rel (%p553) target = $region64
        $region63: #{tpu_custom_call.1} parent=39 // pred_region
          %s557 = ssub.s32 16, 16
          %558 = vsyncadd %s521, %s557
          %s559 = smul.addr %s32, 16
          %s560 = scalar_lea.hbm %s8, %s559
          %s562 = sshll.u32 %s523, 4
          %s563 = int_to_ptr.vmem [resolvable:$true] %s562
          %565 = dma.vmem_to_hbm [thread:$0]  %s563, 16, %s560, %s521
        $region64: #{tpu_custom_call.1} parent=39 // pred_fallthru
          _
      $region40: #{tpu_custom_call.1} parent=5 // pred_fallthru
        _
      %p566 = scmp.le.s32.totalorder 2, %s27
      // Predicated region
      $region65: #{tpu_custom_call.1} parent=5 // pred_check
        %p567 = pneg %p566
      $region66: #{tpu_custom_call.1} parent=5 // pred_check_branch
        %569 = sbr.rel (%p567) target = $region68
      $region67: #{tpu_custom_call.1} parent=5 // pred_region
        %s570 = ssub.s32 %s27, 2
        // Predicated region
        $region69: #{tpu_custom_call.1} parent=67 // pred_check
          %p571 = pneg %p166
        $region70: #{tpu_custom_call.1} parent=67 // pred_check_branch
          %573 = sbr.rel (%p571) target = $region72
        $region71: #{tpu_custom_call.1} parent=67 // pred_region
          %p574 = scmp.lt.s32.totalorder %s33, 1
          %s575 = scalar_select %p574, %s33, 1
          %s576 = smul.addr %s575, 8
          %s577 = scalar_lea.vmem %s5, %s576
        $region72: #{tpu_custom_call.1} parent=67 // pred_fallthru
          _
        // Predicated region
        $region73: #{tpu_custom_call.1} parent=67 // pred_check
          %p578 = pneg %p192
        $region74: #{tpu_custom_call.1} parent=67 // pred_check_branch
          %580 = sbr.rel (%p578) target = $region76
        $region75: #{tpu_custom_call.1} parent=67 // pred_region
          %s581 = sand.u32 %s177, 1
          %s582 = scalar_lea.sflag [#allocation5], %s581
          %s583 = sand.u32 %s177, 1
          %s584 = smul.addr %s583, 8
          %s585 = scalar_lea.vmem [#allocation8], %s584
          %586 = dma.done %s582, 128
        $region76: #{tpu_custom_call.1} parent=67 // pred_fallthru
          _
        // Predicated region
        $region77: #{tpu_custom_call.1} parent=67 // pred_check
          %p587 = pneg %p218
        $region78: #{tpu_custom_call.1} parent=67 // pred_check_branch
          %589 = sbr.rel (%p587) target = $region80
        $region79: #{tpu_custom_call.1} parent=67 // pred_region
          %s590 = sand.u32 %s33, 1
          %s591 = scalar_lea.sflag [#allocation10], %s590
          %s592 = sand.u32 %s203, 1
          %s593 = scalar_lea.vmem [#allocation9], %s592
          %594 = dma.done %s591, 16
        $region80: #{tpu_custom_call.1} parent=67 // pred_fallthru
          _
        // Predicated region
        $region81: #{tpu_custom_call.1} parent=67 // pred_check
          %p595 = pneg %p244
        $region82: #{tpu_custom_call.1} parent=67 // pred_check_branch
          %597 = sbr.rel (%p595) target = $region84
        $region83: #{tpu_custom_call.1} parent=67 // pred_region
          %s598 = sand.u32 %s33, 1
          %s599 = scalar_lea.sflag [#allocation10], %s598
          %s600 = sand.u32 %s229, 1
          %s601 = scalar_lea.vmem [#allocation11], %s600
          %602 = dma.done %s599, 16
        $region84: #{tpu_custom_call.1} parent=67 // pred_fallthru
          _
      $region68: #{tpu_custom_call.1} parent=5 // pred_fallthru
        _
    $region6: #{tpu_custom_call.1} parent=1 // loop_footer
      %s31 = sadd.s32 1, %s27
    $region7: #{tpu_custom_call.1} parent=1 // loop_footer_branch
      %26 = sbr.rel target = $region3
    $region8: #{tpu_custom_call.1} parent=1 // loop_exit
      _
    %603 = vsyncpa [#allocation4], 1
    %s604 = scalar_lea.sflag [#allocation4], 1
    %605 = vsyncpa %s604, 1
    %606 = vsyncpa [#allocation7], 1
    %607 = vsyncpa [#allocation5], 1
    %s608 = scalar_lea.sflag [#allocation5], 1
    %609 = vsyncpa %s608, 1
    %610 = vsyncpa [#allocation10], 1
    %s611 = scalar_lea.sflag [#allocation10], 1
    %612 = vsyncpa %s611, 1

</llo_original>
